<compile_context>
chip_gen: v5e
topology: v5e:2x2
jax: 0.10.0
libtpu: 0.0.40
codegen_flags: <defaults>
</compile_context>

<pallas_src>
import jax
import jax.numpy as jnp
from jax.experimental import pallas as pl
from jax.experimental.pallas import tpu as pltpu

IN_FEATURES = 28 * 28   # 784
HIDDEN = 512
OUT_FEATURES = 10
OUT_PAD = 128           # lane-dense output width; wrapper slices [:, :10]


def mlp_kernel(x_ref, w1_ref, b1_ref, w2_ref, b2_ref, w3_ref, b3_ref, o_ref):
    # x_ref: (TB, 784) f32; w*: bf16 (in, out); b*: f32 (1, out); o_ref: (TB, 128) f32
    x = x_ref[...].astype(jnp.bfloat16)                          # cast in-kernel
    h1 = jnp.dot(x, w1_ref[...], preferred_element_type=jnp.float32)
    h1 = jnp.maximum(h1 + b1_ref[...], 0.0)                      # f32 elementwise
    h2 = jnp.dot(h1.astype(jnp.bfloat16), w2_ref[...],
                 preferred_element_type=jnp.float32)
    h2 = jnp.maximum(h2 + b2_ref[...], 0.0)
    logits = jnp.dot(h2.astype(jnp.bfloat16), w3_ref[...],
                     preferred_element_type=jnp.float32)
    o_ref[...] = logits + b3_ref[...]                            # full 128-lane store


def prepare_params(params):
    """One-time (outside the hot path): transpose to (in, out), pad the 10-wide
    output to 128 lanes, cast weights to bf16. Biases stay f32."""
    w1, b1, w2, b2, w3, b3 = params  # PyTorch layout: W is (out, in)
    w1_t = w1.T.astype(jnp.bfloat16)                             # (784, 512)
    w2_t = w2.T.astype(jnp.bfloat16)                             # (512, 512)
    w3_t = jnp.zeros((HIDDEN, OUT_PAD), jnp.bfloat16)
    w3_t = w3_t.at[:, :OUT_FEATURES].set(w3.T.astype(jnp.bfloat16))
    b1_2d = b1.reshape(1, HIDDEN).astype(jnp.float32)
    b2_2d = b2.reshape(1, HIDDEN).astype(jnp.float32)
    b3_2d = jnp.zeros((1, OUT_PAD), jnp.float32)
    b3_2d = b3_2d.at[0, :OUT_FEATURES].set(b3.astype(jnp.float32))
    return (w1_t, b1_2d, w2_t, b2_2d, w3_t, b3_2d)


def _round_up(n, m):
    return ((n + m - 1) // m) * m


def _choose_batch_tile(B):
    """Batch-tile selection (B is a static Python int under jit)."""
    if B >= 1024:
        return 512                              # fills MXU, >=2 grid steps
    if B >= 512:
        return 256                              # 2-3 grid steps
    if B >= 64:
        # Mid-size: aim for >=2 grid steps so the "parallel" batch axis can be
        # split across the two TensorCores on v7x.
        return _round_up(pl.cdiv(B, 2), 16)
    # Tiny batches: one tile, rounded to 16 rows (bf16 sublane packing).
    return _round_up(B, 16)


@jax.jit
def neural_network_forward(x_nchw, prepared):
    """x_nchw: (B, 1, 28, 28) f32 -> logits (B, 10) f32."""
    B = x_nchw.shape[0]
    w1p, b1p, w2p, b2p, w3p, b3p = prepared

    # nn.Flatten(): flatten all dims except batch (view, no copy). Keep f32;
    # the bf16 cast happens inside the kernel.
    x_flat = x_nchw.reshape(B, IN_FEATURES)                      # (B, 784) f32

    TB = _choose_batch_tile(B)
    B_pad = _round_up(B, TB)
    if B_pad != B:                                               # static check
        x_flat = jnp.pad(x_flat, ((0, B_pad - B), (0, 0)))

    out = pl.pallas_call(
        mlp_kernel,
        out_shape=jax.ShapeDtypeStruct((B_pad, OUT_PAD), jnp.float32),
        grid=(B_pad // TB,),
        in_specs=[
            pl.BlockSpec((TB, IN_FEATURES), lambda i: (i, 0)),      # x tile (streamed)
            pl.BlockSpec((IN_FEATURES, HIDDEN), lambda i: (0, 0)),  # w1 (VMEM-resident)
            pl.BlockSpec((1, HIDDEN), lambda i: (0, 0)),            # b1
            pl.BlockSpec((HIDDEN, HIDDEN), lambda i: (0, 0)),       # w2
            pl.BlockSpec((1, HIDDEN), lambda i: (0, 0)),            # b2
            pl.BlockSpec((HIDDEN, OUT_PAD), lambda i: (0, 0)),      # w3 (lane-padded)
            pl.BlockSpec((1, OUT_PAD), lambda i: (0, 0)),           # b3
        ],
        out_specs=pl.BlockSpec((TB, OUT_PAD), lambda i: (i, 0)),
        compiler_params=pltpu.CompilerParams(
            dimension_semantics=("parallel",)),
    )(x_flat, w1p, b1p, w2p, b2p, w3p, b3p)
    return out[:B, :OUT_FEATURES]


def init_params(key):
    """Deterministic synthetic init with PyTorch Linear weight shapes (out, in)."""
    k1, k2, k3, k4, k5, k6 = jax.random.split(key, 6)
    scale1 = 1.0 / jnp.sqrt(784.0)
    scale2 = 1.0 / jnp.sqrt(512.0)
    w1 = jax.random.uniform(k1, (512, 784), jnp.float32, -scale1, scale1)
    b1 = jax.random.uniform(k2, (512,), jnp.float32, -scale1, scale1)
    w2 = jax.random.uniform(k3, (512, 512), jnp.float32, -scale2, scale2)
    b2 = jax.random.uniform(k4, (512,), jnp.float32, -scale2, scale2)
    w3 = jax.random.uniform(k5, (10, 512), jnp.float32, -scale2, scale2)
    b3 = jax.random.uniform(k6, (10,), jnp.float32, -scale2, scale2)
    return (w1, b1, w2, b2, w3, b3)


def _reference_bf16(x, prepared, B):
    """Same bf16-weight / f32-accumulate path in pure JAX (tight tolerance)."""
    w1p, b1p, w2p, b2p, w3p, b3p = prepared
    xf = x.reshape(B, -1).astype(jnp.bfloat16)
    h = jnp.maximum(jnp.dot(xf, w1p, preferred_element_type=jnp.float32) + b1p, 0.0)
    h = jnp.maximum(jnp.dot(h.astype(jnp.bfloat16), w2p,
                            preferred_element_type=jnp.float32) + b2p, 0.0)
    out = jnp.dot(h.astype(jnp.bfloat16), w3p,
                  preferred_element_type=jnp.float32) + b3p
    return out[:, :OUT_FEATURES]


def _reference_f32(x, params, B):
    """Original full-f32 PyTorch-equivalent path (loose, semantics check)."""
    w1, b1, w2, b2, w3, b3 = params
    xf32 = x.reshape(B, -1)
    hf = jnp.maximum(xf32 @ w1.T + b1, 0.0)
    hf = jnp.maximum(hf @ w2.T + b2, 0.0)
    return hf @ w3.T + b3


if __name__ == "__main__":
    key = jax.random.PRNGKey(0)
    kx, kx2, kp = jax.random.split(key, 3)

    params = init_params(kp)
    prepared = prepare_params(params)  # one-time, outside the hot path

    # Case 1: tiny batch (single grid step, padded 8 -> 16 rows).
    B1 = 8
    x1 = jax.random.normal(kx, (B1, 1, 28, 28), dtype=jnp.float32)
    logits1 = jax.block_until_ready(neural_network_forward(x1, prepared))
    assert logits1.shape == (B1, OUT_FEATURES)
    assert jnp.allclose(logits1, _reference_bf16(x1, prepared, B1), atol=5e-3, rtol=5e-3)
    assert jnp.allclose(logits1, _reference_f32(x1, params, B1), atol=5e-2, rtol=5e-2)

    # Case 2: mid-size batch exercising multi-step grid + batch padding
    # (B=100 -> TB=64, B_pad=128, grid=(2,)).
    B2 = 100
    x2 = jax.random.normal(kx2, (B2, 1, 28, 28), dtype=jnp.float32)
    logits2 = jax.block_until_ready(neural_network_forward(x2, prepared))
    assert logits2.shape == (B2, OUT_FEATURES)
    assert jnp.allclose(logits2, _reference_bf16(x2, prepared, B2), atol=5e-3, rtol=5e-3)
    assert jnp.allclose(logits2, _reference_f32(x2, params, B2), atol=5e-2, rtol=5e-2)

    print("KERNEL_OK")
</pallas_src>

<mosaic_0001>
module attributes {stable_mosaic.version = 11 : i64} {
  func.func @mlp_kernel(%arg0: i32, %arg1: memref<16x784xf32, #tpu.memory_space<vmem>>, %arg2: memref<784x512xbf16, #tpu.memory_space<vmem>>, %arg3: memref<1x512xf32, #tpu.memory_space<vmem>>, %arg4: memref<512x512xbf16, #tpu.memory_space<vmem>>, %arg5: memref<1x512xf32, #tpu.memory_space<vmem>>, %arg6: memref<512x128xbf16, #tpu.memory_space<vmem>>, %arg7: memref<1x128xf32, #tpu.memory_space<vmem>>, %arg8: memref<16x128xf32, #tpu.memory_space<vmem>>) attributes {dimension_semantics = [#tpu.dimension_semantics<parallel>], iteration_bounds = array<i64: 1>, scalar_prefetch = 0 : i64, scratch_operands = 0 : i64, tpu.core_type = #tpu.core_type<tc>, window_params = [{transform_indices = @transform_0, window_bounds = array<i64: 16, 784>}, {pipeline_mode = #tpu.pipeline_mode<synchronous>, transform_indices = @transform_1, window_bounds = array<i64: 784, 512>}, {pipeline_mode = #tpu.pipeline_mode<synchronous>, transform_indices = @transform_2, window_bounds = array<i64: 1, 512>}, {pipeline_mode = #tpu.pipeline_mode<synchronous>, transform_indices = @transform_3, window_bounds = array<i64: 512, 512>}, {pipeline_mode = #tpu.pipeline_mode<synchronous>, transform_indices = @transform_4, window_bounds = array<i64: 1, 512>}, {pipeline_mode = #tpu.pipeline_mode<synchronous>, transform_indices = @transform_5, window_bounds = array<i64: 512, 128>}, {pipeline_mode = #tpu.pipeline_mode<synchronous>, transform_indices = @transform_6, window_bounds = array<i64: 1, 128>}, {transform_indices = @transform_7, window_bounds = array<i64: 16, 128>}]} {
    %c0 = arith.constant 0 : index
    %c0_0 = arith.constant 0 : index
    %0 = vector.load %arg1[%c0, %c0_0] : memref<16x784xf32, #tpu.memory_space<vmem>>, vector<16x784xf32>
    %1 = arith.truncf %0 : vector<16x784xf32> to vector<16x784xbf16>
    %c0_1 = arith.constant 0 : index
    %c0_2 = arith.constant 0 : index
    %2 = vector.load %arg2[%c0_1, %c0_2] : memref<784x512xbf16, #tpu.memory_space<vmem>>, vector<784x512xbf16>
    %cst = arith.constant dense<0.000000e+00> : vector<16x512xf32>
    %3 = tpu.matmul %1, %2, %cst {dimension_numbers = #tpu.dot_dimension_numbers<[1], [0], [0], [1], [0, 0, 1, 1], [], []>} : vector<16x784xbf16>, vector<784x512xbf16>, vector<16x512xf32> -> vector<16x512xf32>
    %c0_3 = arith.constant 0 : index
    %c0_4 = arith.constant 0 : index
    %4 = vector.load %arg3[%c0_3, %c0_4] : memref<1x512xf32, #tpu.memory_space<vmem>>, vector<1x512xf32>
    %5 = vector.broadcast %4 : vector<1x512xf32> to vector<16x512xf32>
    %6 = arith.addf %3, %5 : vector<16x512xf32>
    %cst_5 = arith.constant 0.000000e+00 : f32
    %7 = vector.broadcast %cst_5 : f32 to vector<16x512xf32>
    %8 = arith.maximumf %6, %7 : vector<16x512xf32>
    %9 = arith.truncf %8 : vector<16x512xf32> to vector<16x512xbf16>
    %c0_6 = arith.constant 0 : index
    %c0_7 = arith.constant 0 : index
    %10 = vector.load %arg4[%c0_6, %c0_7] : memref<512x512xbf16, #tpu.memory_space<vmem>>, vector<512x512xbf16>
    %cst_8 = arith.constant dense<0.000000e+00> : vector<16x512xf32>
    %11 = tpu.matmul %9, %10, %cst_8 {dimension_numbers = #tpu.dot_dimension_numbers<[1], [0], [0], [1], [0, 0, 1, 1], [], []>} : vector<16x512xbf16>, vector<512x512xbf16>, vector<16x512xf32> -> vector<16x512xf32>
    %c0_9 = arith.constant 0 : index
    %c0_10 = arith.constant 0 : index
    %12 = vector.load %arg5[%c0_9, %c0_10] : memref<1x512xf32, #tpu.memory_space<vmem>>, vector<1x512xf32>
    %13 = vector.broadcast %12 : vector<1x512xf32> to vector<16x512xf32>
    %14 = arith.addf %11, %13 : vector<16x512xf32>
    %cst_11 = arith.constant 0.000000e+00 : f32
    %15 = vector.broadcast %cst_11 : f32 to vector<16x512xf32>
    %16 = arith.maximumf %14, %15 : vector<16x512xf32>
    %17 = arith.truncf %16 : vector<16x512xf32> to vector<16x512xbf16>
    %c0_12 = arith.constant 0 : index
    %c0_13 = arith.constant 0 : index
    %18 = vector.load %arg6[%c0_12, %c0_13] : memref<512x128xbf16, #tpu.memory_space<vmem>>, vector<512x128xbf16>
    %cst_14 = arith.constant dense<0.000000e+00> : vector<16x128xf32>
    %19 = tpu.matmul %17, %18, %cst_14 {dimension_numbers = #tpu.dot_dimension_numbers<[1], [0], [0], [1], [0, 0, 1, 1], [], []>} : vector<16x512xbf16>, vector<512x128xbf16>, vector<16x128xf32> -> vector<16x128xf32>
    %c0_15 = arith.constant 0 : index
    %c0_16 = arith.constant 0 : index
    %20 = vector.load %arg7[%c0_15, %c0_16] : memref<1x128xf32, #tpu.memory_space<vmem>>, vector<1x128xf32>
    %21 = vector.broadcast %20 : vector<1x128xf32> to vector<16x128xf32>
    %22 = arith.addf %19, %21 : vector<16x128xf32>
    %c0_17 = arith.constant 0 : index
    %c0_18 = arith.constant 0 : index
    %23 = vector.load %arg8[%c0_17, %c0_18] : memref<16x128xf32, #tpu.memory_space<vmem>>, vector<16x128xf32>
    tpu.vector_store %arg8[%c0_17, %c0_18], %22 {strides = array<i32>} : memref<16x128xf32, #tpu.memory_space<vmem>>, vector<16x128xf32>,
    return
  }
  func.func @transform_0(%arg0: i32) -> (i32, i32) {
    %c0_i32 = arith.constant 0 : i32
    %c0_i32_0 = arith.constant 0 : i32
    return %arg0, %c0_i32 : i32, i32
  }
  func.func @transform_1(%arg0: i32) -> (i32, i32) {
    %c0_i32 = arith.constant 0 : i32
    %c0_i32_0 = arith.constant 0 : i32
    %c0_i32_1 = arith.constant 0 : i32
    return %c0_i32, %c0_i32_0 : i32, i32
  }
  func.func @transform_2(%arg0: i32) -> (i32, i32) {
    %c0_i32 = arith.constant 0 : i32
    %c0_i32_0 = arith.constant 0 : i32
    %c0_i32_1 = arith.constant 0 : i32
    return %c0_i32, %c0_i32_0 : i32, i32
  }
  func.func @transform_3(%arg0: i32) -> (i32, i32) {
    %c0_i32 = arith.constant 0 : i32
    %c0_i32_0 = arith.constant 0 : i32
    %c0_i32_1 = arith.constant 0 : i32
    return %c0_i32, %c0_i32_0 : i32, i32
  }
  func.func @transform_4(%arg0: i32) -> (i32, i32) {
    %c0_i32 = arith.constant 0 : i32
    %c0_i32_0 = arith.constant 0 : i32
    %c0_i32_1 = arith.constant 0 : i32
    return %c0_i32, %c0_i32_0 : i32, i32
  }
  func.func @transform_5(%arg0: i32) -> (i32, i32) {
    %c0_i32 = arith.constant 0 : i32
    %c0_i32_0 = arith.constant 0 : i32
    %c0_i32_1 = arith.constant 0 : i32
    return %c0_i32, %c0_i32_0 : i32, i32
  }
  func.func @transform_6(%arg0: i32) -> (i32, i32) {
    %c0_i32 = arith.constant 0 : i32
    %c0_i32_0 = arith.constant 0 : i32
    %c0_i32_1 = arith.constant 0 : i32
    return %c0_i32, %c0_i32_0 : i32, i32
  }
  func.func @transform_7(%arg0: i32) -> (i32, i32) {
    %c0_i32 = arith.constant 0 : i32
    %c0_i32_0 = arith.constant 0 : i32
    return %arg0, %c0_i32 : i32, i32
  }
}

</mosaic_0001>

<llo_original>
// kernel: neural_network_forward.1
$region0: #{neural_network_forward.1}
  #allocation0 [shape = 'u32[]', space=smem, size = 0x4, offset = 0x4, fixed_abs, tag = 'smem constant byte address 0x4 - core index']
  #allocation1 [shape = 'u32[72,128]{1,0:T(1,128)}', space=vmem, size = 0x9000, scoped, tag = 'internal scratch']
  %s0 = inlined_call_operand.vmem [shape: f32[16,784], index: 0, kind: input, shape index: {}]
  %s1 = inlined_call_operand.hbm [shape: bf16[784,512], index: 1, kind: input, shape index: {}]
  %s2 = inlined_call_operand.vmem [shape: f32[1,512], index: 2, kind: input, shape index: {}]
  %s3 = inlined_call_operand.hbm [shape: bf16[512,512], index: 3, kind: input, shape index: {}]
  %s4 = inlined_call_operand.vmem [shape: f32[1,512], index: 4, kind: input, shape index: {}]
  %s5 = inlined_call_operand.vmem [shape: bf16[512,128], index: 5, kind: input, shape index: {}]
  %s6 = inlined_call_operand.vmem [shape: f32[1,128], index: 6, kind: input, shape index: {}]
  %s7 = inlined_call_operand.vmem [shape: f32[16,128], index: 7, kind: output, shape index: {}]
  %s8 = sld [smem:[#allocation0]]
  $region46: #{neural_network_forward.1} parent=0
    _
  %s10 = ssub.s32 1, %s8
  %s11 = scalar_select 0, %s10, %s8
  $region1: #{neural_network_forward.1} parent=0
    #allocation2 [shape = 'u8[802816]{0}', space=vmem, size = 0xc4000, scoped, tag = 'input window, operand 1, single buffered']
    #allocation3 [shape = 's32[1]{0}', space=sflag, size = 0x4, scoped, tag = 'scoped memory for neural_network_forward.1']
    #allocation4 [shape = 'u8[524288]{0}', space=vmem, size = 0x80000, scoped, tag = 'input window, operand 3, single buffered']
    #allocation5 [shape = 's32[1]{0}', space=sflag, size = 0x4, scoped, tag = 'scoped memory for neural_network_forward.1']
    %12 = vsyncpa [#allocation3], 0
    %13 = vsyncpa [#allocation5], 0
    // Predicated region
    $region2: #{neural_network_forward.1} parent=1 // pred_check
      _
    $region3: #{neural_network_forward.1} parent=1 // pred_check_branch
      %15 = sbr.rel (0) target = $region5
    $region4: #{neural_network_forward.1} parent=1 // pred_region
      _
    $region5: #{neural_network_forward.1} parent=1 // pred_fallthru
      _
    // Predicated region
    $region6: #{neural_network_forward.1} parent=1 // pred_check
      _
    $region7: #{neural_network_forward.1} parent=1 // pred_check_branch
      %17 = sbr.rel (0) target = $region9
    $region8: #{neural_network_forward.1} parent=1 // pred_region
      %19 = vsyncadd [#allocation3], 0
      %s20 = sshll.u32 %s1, 4
      %s21 = int_to_ptr.hbm [resolvable:$true] %s20
      %s22 = sshll.u32 [#allocation2], 4
      %s23 = int_to_ptr.vmem [resolvable:$true] %s22
      %28 = dma.hbm_to_vmem [thread:$0]  %s21, 25088, %s23, [#allocation3], 256, 256, 16
    $region9: #{neural_network_forward.1} parent=1 // pred_fallthru
      _
    // Predicated region
    $region10: #{neural_network_forward.1} parent=1 // pred_check
      _
    $region11: #{neural_network_forward.1} parent=1 // pred_check_branch
      %30 = sbr.rel (0) target = $region13
    $region12: #{neural_network_forward.1} parent=1 // pred_region
      _
    $region13: #{neural_network_forward.1} parent=1 // pred_fallthru
      _
    // Predicated region
    $region14: #{neural_network_forward.1} parent=1 // pred_check
      _
    $region15: #{neural_network_forward.1} parent=1 // pred_check_branch
      %32 = sbr.rel (0) target = $region17
    $region16: #{neural_network_forward.1} parent=1 // pred_region
      %34 = vsyncadd [#allocation5], 0
      %s35 = sshll.u32 %s3, 4
      %s36 = int_to_ptr.hbm [resolvable:$true] %s35
      %s37 = sshll.u32 [#allocation4], 4
      %s38 = int_to_ptr.vmem [resolvable:$true] %s37
      %43 = dma.hbm_to_vmem [thread:$0]  %s36, 16384, %s38, [#allocation5], 256, 256, 16
    $region17: #{neural_network_forward.1} parent=1 // pred_fallthru
      _
    // Predicated region
    $region18: #{neural_network_forward.1} parent=1 // pred_check
      _
    $region19: #{neural_network_forward.1} parent=1 // pred_check_branch
      %45 = sbr.rel (0) target = $region21
    $region20: #{neural_network_forward.1} parent=1 // pred_region
      _
    $region21: #{neural_network_forward.1} parent=1 // pred_fallthru
      _
    // Predicated region
    $region22: #{neural_network_forward.1} parent=1 // pred_check
      _
    $region23: #{neural_network_forward.1} parent=1 // pred_check_branch
      %47 = sbr.rel (0) target = $region25
    $region24: #{neural_network_forward.1} parent=1 // pred_region
      _
    $region25: #{neural_network_forward.1} parent=1 // pred_fallthru
      _
    // Predicated region
    $region26: #{neural_network_forward.1} parent=1 // pred_check
      _
    $region27: #{neural_network_forward.1} parent=1 // pred_check_branch
      %49 = sbr.rel (0) target = $region29
    $region28: #{neural_network_forward.1} parent=1 // pred_region
      _
    $region29: #{neural_network_forward.1} parent=1 // pred_fallthru
      _
    // Predicated region
    $region30: #{neural_network_forward.1} parent=1 // pred_check
      _
    $region31: #{neural_network_forward.1} parent=1 // pred_check_branch
      %51 = sbr.rel (0) target = $region33
    $region32: #{neural_network_forward.1} parent=1 // pred_region
      %53 = dma.done [#allocation3], 25088
    $region33: #{neural_network_forward.1} parent=1 // pred_fallthru
      _
    // Predicated region
    $region34: #{neural_network_forward.1} parent=1 // pred_check
      _
    $region35: #{neural_network_forward.1} parent=1 // pred_check_branch
      %55 = sbr.rel (0) target = $region37
    $region36: #{neural_network_forward.1} parent=1 // pred_region
      %57 = dma.done [#allocation5], 16384
    $region37: #{neural_network_forward.1} parent=1 // pred_fallthru
      _
    %v59 = vld [vmem:[%s0] sm:$0xff]
    %v60 = vld [vmem:[%s0 + $0x8] sm:$0xff]
    %v61 = vld [vmem:[%s0 + $0x10] sm:$0xff]
    %v62 = vld [vmem:[%s0 + $0x18] sm:$0xff]
    %v63 = vld [vmem:[%s0 + $0x20] sm:$0xff]
    %v64 = vld [vmem:[%s0 + $0x28] sm:$0xff]
    %v65 = vld [vmem:[%s0 + $0x30] sm:$0xff]
    %v66 = vld [vmem:[%s0 + $0x38] sm:$0xff]
    %v67 = vld [vmem:[%s0 + $0x40] sm:$0xff]
    %v68 = vld [vmem:[%s0 + $0x48] sm:$0xff]
    %v69 = vld [vmem:[%s0 + $0x50] sm:$0xff]
    %v70 = vld [vmem:[%s0 + $0x58] sm:$0xff]
    %v71 = vld [vmem:[%s0 + $0x60] sm:$0xff]
    %v72 = vld [vmem:[%s0 + $0x68] sm:$0xff]
    %v73 = vpack.c.bf16 %v66, %v59
    %v74 = vpack.c.bf16 %v67, %v60
    %v75 = vpack.c.bf16 %v68, %v61
    %v76 = vpack.c.bf16 %v69, %v62
    %v77 = vpack.c.bf16 %v70, %v63
    %v78 = vpack.c.bf16 %v71, %v64
    %v79 = vpack.c.bf16 %v72, %v65
    %v80 = vld [vmem:[#allocation2] sm:$0xff]
    %v81 = vld [vmem:[#allocation2 + $0x8] sm:$0xff]
    %v82 = vld [vmem:[#allocation2 + $0x10] sm:$0xff]
    %v83 = vld [vmem:[#allocation2 + $0x18] sm:$0xff]
    %v84 = vld [vmem:[#allocation2 + $0x20] sm:$0xff]
    %v85 = vld [vmem:[#allocation2 + $0x28] sm:$0xff]
    %v86 = vld [vmem:[#allocation2 + $0x30] sm:$0xff]
    %v87 = vld [vmem:[#allocation2 + $0x38] sm:$0xff]
    %v88 = vld [vmem:[#allocation2 + $0x40] sm:$0xff]
    %v89 = vld [vmem:[#allocation2 + $0x48] sm:$0xff]
    %v90 = vld [vmem:[#allocation2 + $0x50] sm:$0xff]
    %v91 = vld [vmem:[#allocation2 + $0x58] sm:$0xff]
    %v92 = vld [vmem:[#allocation2 + $0x60] sm:$0xff]
    %v93 = vld [vmem:[#allocation2 + $0x68] sm:$0xff]
    %v94 = vld [vmem:[#allocation2 + $0x70] sm:$0xff]
    %v95 = vld [vmem:[#allocation2 + $0x78] sm:$0xff]
    %v96 = vld [vmem:[#allocation2 + $0x80] sm:$0xff]
    %v97 = vld [vmem:[#allocation2 + $0x88] sm:$0xff]
    %v98 = vld [vmem:[#allocation2 + $0x90] sm:$0xff]
    %v99 = vld [vmem:[#allocation2 + $0x98] sm:$0xff]
    %v100 = vld [vmem:[#allocation2 + $0xa0] sm:$0xff]
    %v101 = vld [vmem:[#allocation2 + $0xa8] sm:$0xff]
    %v102 = vld [vmem:[#allocation2 + $0xb0] sm:$0xff]
    %v103 = vld [vmem:[#allocation2 + $0xb8] sm:$0xff]
    %v104 = vld [vmem:[#allocation2 + $0xc0] sm:$0xff]
    %v105 = vld [vmem:[#allocation2 + $0xc8] sm:$0xff]
    %v106 = vld [vmem:[#allocation2 + $0xd0] sm:$0xff]
    %v107 = vld [vmem:[#allocation2 + $0xd8] sm:$0xff]
    %v108 = vld [vmem:[#allocation2 + $0xe0] sm:$0xff]
    %v109 = vld [vmem:[#allocation2 + $0xe8] sm:$0xff]
    %v110 = vld [vmem:[#allocation2 + $0xf0] sm:$0xff]
    %v111 = vld [vmem:[#allocation2 + $0xf8] sm:$0xff]
    %v112 = vld [vmem:[#allocation2 + $0x100] sm:$0xff]
    %v113 = vld [vmem:[#allocation2 + $0x108] sm:$0xff]
    %v114 = vld [vmem:[#allocation2 + $0x110] sm:$0xff]
    %v115 = vld [vmem:[#allocation2 + $0x118] sm:$0xff]
    %v116 = vld [vmem:[#allocation2 + $0x120] sm:$0xff]
    %v117 = vld [vmem:[#allocation2 + $0x128] sm:$0xff]
    %v118 = vld [vmem:[#allocation2 + $0x130] sm:$0xff]
    %v119 = vld [vmem:[#allocation2 + $0x138] sm:$0xff]
    %v120 = vld [vmem:[#allocation2 + $0x140] sm:$0xff]
    %v121 = vld [vmem:[#allocation2 + $0x148] sm:$0xff]
    %v122 = vld [vmem:[#allocation2 + $0x150] sm:$0xff]
    %v123 = vld [vmem:[#allocation2 + $0x158] sm:$0xff]
    %v124 = vld [vmem:[#allocation2 + $0x160] sm:$0xff]
    %v125 = vld [vmem:[#allocation2 + $0x168] sm:$0xff]
    %v126 = vld [vmem:[#allocation2 + $0x170] sm:$0xff]
    %v127 = vld [vmem:[#allocation2 + $0x178] sm:$0xff]
    %v128 = vld [vmem:[#allocation2 + $0x180] sm:$0xff]
    %v129 = vld [vmem:[#allocation2 + $0x188] sm:$0xff]
    %v130 = vld [vmem:[#allocation2 + $0x190] sm:$0xff]
    %v131 = vld [vmem:[#allocation2 + $0x198] sm:$0xff]
    %v132 = vld [vmem:[#allocation2 + $0x1a0] sm:$0xff]
    %v133 = vld [vmem:[#allocation2 + $0x1a8] sm:$0xff]
    %v134 = vld [vmem:[#allocation2 + $0x1b0] sm:$0xff]
    %v135 = vld [vmem:[#allocation2 + $0x1b8] sm:$0xff]
    %v136 = vld [vmem:[#allocation2 + $0x1c0] sm:$0xff]
    %v137 = vld [vmem:[#allocation2 + $0x1c8] sm:$0xff]
    %v138 = vld [vmem:[#allocation2 + $0x1d0] sm:$0xff]
    %v139 = vld [vmem:[#allocation2 + $0x1d8] sm:$0xff]
    %v140 = vld [vmem:[#allocation2 + $0x1e0] sm:$0xff]
    %v141 = vld [vmem:[#allocation2 + $0x1e8] sm:$0xff]
    %v142 = vld [vmem:[#allocation2 + $0x1f0] sm:$0xff]
    %v143 = vld [vmem:[#allocation2 + $0x1f8] sm:$0xff]
    %v144 = vld [vmem:[#allocation2 + $0x200] sm:$0xff]
    %v145 = vld [vmem:[#allocation2 + $0x208] sm:$0xff]
    %v146 = vld [vmem:[#allocation2 + $0x210] sm:$0xff]
    %v147 = vld [vmem:[#allocation2 + $0x218] sm:$0xff]
    %v148 = vld [vmem:[#allocation2 + $0x220] sm:$0xff]
    %v149 = vld [vmem:[#allocation2 + $0x228] sm:$0xff]
    %v150 = vld [vmem:[#allocation2 + $0x230] sm:$0xff]
    %v151 = vld [vmem:[#allocation2 + $0x238] sm:$0xff]
    %v152 = vld [vmem:[#allocation2 + $0x240] sm:$0xff]
    %v153 = vld [vmem:[#allocation2 + $0x248] sm:$0xff]
    %v154 = vld [vmem:[#allocation2 + $0x250] sm:$0xff]
    %v155 = vld [vmem:[#allocation2 + $0x258] sm:$0xff]
    %v156 = vld [vmem:[#allocation2 + $0x260] sm:$0xff]
    %v157 = vld [vmem:[#allocation2 + $0x268] sm:$0xff]
    %v158 = vld [vmem:[#allocation2 + $0x270] sm:$0xff]
    %v159 = vld [vmem:[#allocation2 + $0x278] sm:$0xff]
    %v160 = vld [vmem:[#allocation2 + $0x280] sm:$0xff]
    %v161 = vld [vmem:[#allocation2 + $0x288] sm:$0xff]
    %v162 = vld [vmem:[#allocation2 + $0x290] sm:$0xff]
    %v163 = vld [vmem:[#allocation2 + $0x298] sm:$0xff]
    %v164 = vld [vmem:[#allocation2 + $0x2a0] sm:$0xff]
    %v165 = vld [vmem:[#allocation2 + $0x2a8] sm:$0xff]
    %v166 = vld [vmem:[#allocation2 + $0x2b0] sm:$0xff]
    %v167 = vld [vmem:[#allocation2 + $0x2b8] sm:$0xff]
    %v168 = vld [vmem:[#allocation2 + $0x2c0] sm:$0xff]
    %v169 = vld [vmem:[#allocation2 + $0x2c8] sm:$0xff]
    %v170 = vld [vmem:[#allocation2 + $0x2d0] sm:$0xff]
    %v171 = vld [vmem:[#allocation2 + $0x2d8] sm:$0xff]
    %v172 = vld [vmem:[#allocation2 + $0x2e0] sm:$0xff]
    %v173 = vld [vmem:[#allocation2 + $0x2e8] sm:$0xff]
    %v174 = vld [vmem:[#allocation2 + $0x2f0] sm:$0xff]
    %v175 = vld [vmem:[#allocation2 + $0x2f8] sm:$0xff]
    %v176 = vld [vmem:[#allocation2 + $0x300] sm:$0xff]
    %v177 = vld [vmem:[#allocation2 + $0x308] sm:$0xff]
    %v178 = vld [vmem:[#allocation2 + $0x310] sm:$0xff]
    %v179 = vld [vmem:[#allocation2 + $0x318] sm:$0xff]
    %v180 = vld [vmem:[#allocation2 + $0x320] sm:$0xff]
    %v181 = vld [vmem:[#allocation2 + $0x328] sm:$0xff]
    %v182 = vld [vmem:[#allocation2 + $0x330] sm:$0xff]
    %v183 = vld [vmem:[#allocation2 + $0x338] sm:$0xff]
    %v184 = vld [vmem:[#allocation2 + $0x340] sm:$0xff]
    %v185 = vld [vmem:[#allocation2 + $0x348] sm:$0xff]
    %v186 = vld [vmem:[#allocation2 + $0x350] sm:$0xff]
    %v187 = vld [vmem:[#allocation2 + $0x358] sm:$0xff]
    %v188 = vld [vmem:[#allocation2 + $0x360] sm:$0xff]
    %v189 = vld [vmem:[#allocation2 + $0x368] sm:$0xff]
    %v190 = vld [vmem:[#allocation2 + $0x370] sm:$0xff]
    %v191 = vld [vmem:[#allocation2 + $0x378] sm:$0xff]
    %v192 = vld [vmem:[#allocation2 + $0x380] sm:$0xff]
    %v193 = vld [vmem:[#allocation2 + $0x388] sm:$0xff]
    %v194 = vld [vmem:[#allocation2 + $0x390] sm:$0xff]
    %v195 = vld [vmem:[#allocation2 + $0x398] sm:$0xff]
    %v196 = vld [vmem:[#allocation2 + $0x3a0] sm:$0xff]
    %v197 = vld [vmem:[#allocation2 + $0x3a8] sm:$0xff]
    %v198 = vld [vmem:[#allocation2 + $0x3b0] sm:$0xff]
    %v199 = vld [vmem:[#allocation2 + $0x3b8] sm:$0xff]
    %v200 = vld [vmem:[#allocation2 + $0x3c0] sm:$0xff]
    %v201 = vld [vmem:[#allocation2 + $0x3c8] sm:$0xff]
    %v202 = vld [vmem:[#allocation2 + $0x3d0] sm:$0xff]
    %v203 = vld [vmem:[#allocation2 + $0x3d8] sm:$0xff]
    %v204 = vld [vmem:[#allocation2 + $0x3e0] sm:$0xff]
    %v205 = vld [vmem:[#allocation2 + $0x3e8] sm:$0xff]
    %v206 = vld [vmem:[#allocation2 + $0x3f0] sm:$0xff]
    %v207 = vld [vmem:[#allocation2 + $0x3f8] sm:$0xff]
    %v208 = vld [vmem:[#allocation2 + $0x400] sm:$0xff]
    %v209 = vld [vmem:[#allocation2 + $0x408] sm:$0xff]
    %v210 = vld [vmem:[#allocation2 + $0x410] sm:$0xff]
    %v211 = vld [vmem:[#allocation2 + $0x418] sm:$0xff]
    %v212 = vld [vmem:[#allocation2 + $0x420] sm:$0xff]
    %v213 = vld [vmem:[#allocation2 + $0x428] sm:$0xff]
    %v214 = vld [vmem:[#allocation2 + $0x430] sm:$0xff]
    %v215 = vld [vmem:[#allocation2 + $0x438] sm:$0xff]
    %v216 = vld [vmem:[#allocation2 + $0x440] sm:$0xff]
    %v217 = vld [vmem:[#allocation2 + $0x448] sm:$0xff]
    %v218 = vld [vmem:[#allocation2 + $0x450] sm:$0xff]
    %v219 = vld [vmem:[#allocation2 + $0x458] sm:$0xff]
    %v220 = vld [vmem:[#allocation2 + $0x460] sm:$0xff]
    %v221 = vld [vmem:[#allocation2 + $0x468] sm:$0xff]
    %v222 = vld [vmem:[#allocation2 + $0x470] sm:$0xff]
    %v223 = vld [vmem:[#allocation2 + $0x478] sm:$0xff]
    %v224 = vld [vmem:[#allocation2 + $0x480] sm:$0xff]
    %v225 = vld [vmem:[#allocation2 + $0x488] sm:$0xff]
    %v226 = vld [vmem:[#allocation2 + $0x490] sm:$0xff]
    %v227 = vld [vmem:[#allocation2 + $0x498] sm:$0xff]
    %v228 = vld [vmem:[#allocation2 + $0x4a0] sm:$0xff]
    %v229 = vld [vmem:[#allocation2 + $0x4a8] sm:$0xff]
    %v230 = vld [vmem:[#allocation2 + $0x4b0] sm:$0xff]
    %v231 = vld [vmem:[#allocation2 + $0x4b8] sm:$0xff]
    %v232 = vld [vmem:[#allocation2 + $0x4c0] sm:$0xff]
    %v233 = vld [vmem:[#allocation2 + $0x4c8] sm:$0xff]
    %v234 = vld [vmem:[#allocation2 + $0x4d0] sm:$0xff]
    %v235 = vld [vmem:[#allocation2 + $0x4d8] sm:$0xff]
    %v236 = vld [vmem:[#allocation2 + $0x4e0] sm:$0xff]
    %v237 = vld [vmem:[#allocation2 + $0x4e8] sm:$0xff]
    %v238 = vld [vmem:[#allocation2 + $0x4f0] sm:$0xff]
    %v239 = vld [vmem:[#allocation2 + $0x4f8] sm:$0xff]
    %v240 = vld [vmem:[#allocation2 + $0x500] sm:$0xff]
    %v241 = vld [vmem:[#allocation2 + $0x508] sm:$0xff]
    %v242 = vld [vmem:[#allocation2 + $0x510] sm:$0xff]
    %v243 = vld [vmem:[#allocation2 + $0x518] sm:$0xff]
    %v244 = vld [vmem:[#allocation2 + $0x520] sm:$0xff]
    %v245 = vld [vmem:[#allocation2 + $0x528] sm:$0xff]
    %v246 = vld [vmem:[#allocation2 + $0x530] sm:$0xff]
    %v247 = vld [vmem:[#allocation2 + $0x538] sm:$0xff]
    %v248 = vld [vmem:[#allocation2 + $0x540] sm:$0xff]
    %v249 = vld [vmem:[#allocation2 + $0x548] sm:$0xff]
    %v250 = vld [vmem:[#allocation2 + $0x550] sm:$0xff]
    %v251 = vld [vmem:[#allocation2 + $0x558] sm:$0xff]
    %v252 = vld [vmem:[#allocation2 + $0x560] sm:$0xff]
    %v253 = vld [vmem:[#allocation2 + $0x568] sm:$0xff]
    %v254 = vld [vmem:[#allocation2 + $0x570] sm:$0xff]
    %v255 = vld [vmem:[#allocation2 + $0x578] sm:$0xff]
    %v256 = vld [vmem:[#allocation2 + $0x580] sm:$0xff]
    %v257 = vld [vmem:[#allocation2 + $0x588] sm:$0xff]
    %v258 = vld [vmem:[#allocation2 + $0x590] sm:$0xff]
    %v259 = vld [vmem:[#allocation2 + $0x598] sm:$0xff]
    %v260 = vld [vmem:[#allocation2 + $0x5a0] sm:$0xff]
    %v261 = vld [vmem:[#allocation2 + $0x5a8] sm:$0xff]
    %v262 = vld [vmem:[#allocation2 + $0x5b0] sm:$0xff]
    %v263 = vld [vmem:[#allocation2 + $0x5b8] sm:$0xff]
    %v264 = vld [vmem:[#allocation2 + $0x5c0] sm:$0xff]
    %v265 = vld [vmem:[#allocation2 + $0x5c8] sm:$0xff]
    %v266 = vld [vmem:[#allocation2 + $0x5d0] sm:$0xff]
    %v267 = vld [vmem:[#allocation2 + $0x5d8] sm:$0xff]
    %v268 = vld [vmem:[#allocation2 + $0x5e0] sm:$0xff]
    %v269 = vld [vmem:[#allocation2 + $0x5e8] sm:$0xff]
    %v270 = vld [vmem:[#allocation2 + $0x5f0] sm:$0xff]
    %v271 = vld [vmem:[#allocation2 + $0x5f8] sm:$0xff]
    %v272 = vld [vmem:[#allocation2 + $0x600] sm:$0xff]
    %v273 = vld [vmem:[#allocation2 + $0x608] sm:$0xff]
    %v274 = vld [vmem:[#allocation2 + $0x610] sm:$0xff]
    %v275 = vld [vmem:[#allocation2 + $0x618] sm:$0xff]
    %v276 = vld [vmem:[%s2] sm:$0xf]
    %v278 = vperm.slane %v276, 0
    %v279 = vperm.slane %v276, 1
    %v280 = vperm.slane %v276, 2
    %v281 = vperm.slane %v276, 3
    %v482 = vunpack.c.l.b16 %v80
    %v483 = vunpack.c.h.b16 %v80
    %v484 = vunpack.c.l.b16 %v81
    %v485 = vunpack.c.h.b16 %v81
    %v486 = vunpack.c.l.b16 %v82
    %v487 = vunpack.c.h.b16 %v82
    %v488 = vunpack.c.l.b16 %v83
    %v489 = vunpack.c.h.b16 %v83
    %v490 = vunpack.c.l.b16 %v84
    %v491 = vunpack.c.h.b16 %v84
    %v492 = vunpack.c.l.b16 %v85
    %v493 = vunpack.c.h.b16 %v85
    %v494 = vunpack.c.l.b16 %v86
    %v495 = vunpack.c.h.b16 %v86
    %v496 = vunpack.c.l.b16 %v87
    %v497 = vunpack.c.h.b16 %v87
    %v498 = vunpack.c.l.b16 %v88
    %v499 = vunpack.c.h.b16 %v88
    %v500 = vunpack.c.l.b16 %v89
    %v501 = vunpack.c.h.b16 %v89
    %v502 = vunpack.c.l.b16 %v90
    %v503 = vunpack.c.h.b16 %v90
    %v504 = vunpack.c.l.b16 %v91
    %v505 = vunpack.c.h.b16 %v91
    %v506 = vunpack.c.l.b16 %v92
    %v507 = vunpack.c.h.b16 %v92
    %v508 = vunpack.c.l.b16 %v93
    %v509 = vunpack.c.h.b16 %v93
    %v510 = vunpack.c.l.b16 %v94
    %v511 = vunpack.c.h.b16 %v94
    %v512 = vunpack.c.l.b16 %v95
    %v513 = vunpack.c.h.b16 %v95
    %v514 = vunpack.c.l.b16 %v96
    %v515 = vunpack.c.h.b16 %v96
    %v516 = vunpack.c.l.b16 %v97
    %v517 = vunpack.c.h.b16 %v97
    %v518 = vunpack.c.l.b16 %v98
    %v519 = vunpack.c.h.b16 %v98
    %v520 = vunpack.c.l.b16 %v99
    %v521 = vunpack.c.h.b16 %v99
    %v522 = vunpack.c.l.b16 %v100
    %v523 = vunpack.c.h.b16 %v100
    %v524 = vunpack.c.l.b16 %v101
    %v525 = vunpack.c.h.b16 %v101
    %v526 = vunpack.c.l.b16 %v102
    %v527 = vunpack.c.h.b16 %v102
    %v528 = vunpack.c.l.b16 %v103
    %v529 = vunpack.c.h.b16 %v103
    %v530 = vunpack.c.l.b16 %v104
    %v531 = vunpack.c.h.b16 %v104
    %v532 = vunpack.c.l.b16 %v105
    %v533 = vunpack.c.h.b16 %v105
    %v534 = vunpack.c.l.b16 %v106
    %v535 = vunpack.c.h.b16 %v106
    %v536 = vunpack.c.l.b16 %v107
    %v537 = vunpack.c.h.b16 %v107
    %v538 = vunpack.c.l.b16 %v108
    %v539 = vunpack.c.h.b16 %v108
    %v540 = vunpack.c.l.b16 %v109
    %v541 = vunpack.c.h.b16 %v109
    %v542 = vunpack.c.l.b16 %v110
    %v543 = vunpack.c.h.b16 %v110
    %v544 = vunpack.c.l.b16 %v111
    %v545 = vunpack.c.h.b16 %v111
    %v546 = vunpack.c.l.b16 %v112
    %v547 = vunpack.c.h.b16 %v112
    %v548 = vunpack.c.l.b16 %v113
    %v549 = vunpack.c.h.b16 %v113
    %v550 = vunpack.c.l.b16 %v114
    %v551 = vunpack.c.h.b16 %v114
    %v552 = vunpack.c.l.b16 %v115
    %v553 = vunpack.c.h.b16 %v115
    %v554 = vunpack.c.l.b16 %v116
    %v555 = vunpack.c.h.b16 %v116
    %v556 = vunpack.c.l.b16 %v117
    %v557 = vunpack.c.h.b16 %v117
    %v558 = vunpack.c.l.b16 %v118
    %v559 = vunpack.c.h.b16 %v118
    %v560 = vunpack.c.l.b16 %v119
    %v561 = vunpack.c.h.b16 %v119
    %v562 = vunpack.c.l.b16 %v120
    %v563 = vunpack.c.h.b16 %v120
    %v564 = vunpack.c.l.b16 %v121
    %v565 = vunpack.c.h.b16 %v121
    %v566 = vunpack.c.l.b16 %v122
    %v567 = vunpack.c.h.b16 %v122
    %v568 = vunpack.c.l.b16 %v123
    %v569 = vunpack.c.h.b16 %v123
    %v570 = vunpack.c.l.b16 %v124
    %v571 = vunpack.c.h.b16 %v124
    %v572 = vunpack.c.l.b16 %v125
    %v573 = vunpack.c.h.b16 %v125
    %v574 = vunpack.c.l.b16 %v126
    %v575 = vunpack.c.h.b16 %v126
    %v576 = vunpack.c.l.b16 %v127
    %v577 = vunpack.c.h.b16 %v127
    %v578 = vunpack.c.l.b16 %v128
    %v579 = vunpack.c.h.b16 %v128
    %v580 = vunpack.c.l.b16 %v129
    %v581 = vunpack.c.h.b16 %v129
    %v582 = vunpack.c.l.b16 %v130
    %v583 = vunpack.c.h.b16 %v130
    %v584 = vunpack.c.l.b16 %v131
    %v585 = vunpack.c.h.b16 %v131
    %v586 = vunpack.c.l.b16 %v132
    %v587 = vunpack.c.h.b16 %v132
    %v588 = vunpack.c.l.b16 %v133
    %v589 = vunpack.c.h.b16 %v133
    %v590 = vunpack.c.l.b16 %v134
    %v591 = vunpack.c.h.b16 %v134
    %v592 = vunpack.c.l.b16 %v135
    %v593 = vunpack.c.h.b16 %v135
    %v594 = vunpack.c.l.b16 %v136
    %v595 = vunpack.c.h.b16 %v136
    %v596 = vunpack.c.l.b16 %v137
    %v597 = vunpack.c.h.b16 %v137
    %v598 = vunpack.c.l.b16 %v138
    %v599 = vunpack.c.h.b16 %v138
    %v600 = vunpack.c.l.b16 %v139
    %v601 = vunpack.c.h.b16 %v139
    %v602 = vunpack.c.l.b16 %v140
    %v603 = vunpack.c.h.b16 %v140
    %v604 = vunpack.c.l.b16 %v141
    %v605 = vunpack.c.h.b16 %v141
    %v606 = vunpack.c.l.b16 %v142
    %v607 = vunpack.c.h.b16 %v142
    %v608 = vunpack.c.l.b16 %v143
    %v609 = vunpack.c.h.b16 %v143
    %v610 = vunpack.c.l.b16 %v144
    %v611 = vunpack.c.h.b16 %v144
    %v612 = vunpack.c.l.b16 %v145
    %v613 = vunpack.c.h.b16 %v145
    %v614 = vunpack.c.l.b16 %v146
    %v615 = vunpack.c.h.b16 %v146
    %v616 = vunpack.c.l.b16 %v147
    %v617 = vunpack.c.h.b16 %v147
    %v618 = vunpack.c.l.b16 %v148
    %v619 = vunpack.c.h.b16 %v148
    %v620 = vunpack.c.l.b16 %v149
    %v621 = vunpack.c.h.b16 %v149
    %v622 = vunpack.c.l.b16 %v150
    %v623 = vunpack.c.h.b16 %v150
    %v624 = vunpack.c.l.b16 %v151
    %v625 = vunpack.c.h.b16 %v151
    %v626 = vunpack.c.l.b16 %v152
    %v627 = vunpack.c.h.b16 %v152
    %v628 = vunpack.c.l.b16 %v153
    %v629 = vunpack.c.h.b16 %v153
    %v630 = vunpack.c.l.b16 %v154
    %v631 = vunpack.c.h.b16 %v154
    %v632 = vunpack.c.l.b16 %v155
    %v633 = vunpack.c.h.b16 %v155
    %v634 = vunpack.c.l.b16 %v156
    %v635 = vunpack.c.h.b16 %v156
    %v636 = vunpack.c.l.b16 %v157
    %v637 = vunpack.c.h.b16 %v157
    %v638 = vunpack.c.l.b16 %v158
    %v639 = vunpack.c.h.b16 %v158
    %v640 = vunpack.c.l.b16 %v159
    %v641 = vunpack.c.h.b16 %v159
    %v642 = vunpack.c.l.b16 %v160
    %v643 = vunpack.c.h.b16 %v160
    %v644 = vunpack.c.l.b16 %v161
    %v645 = vunpack.c.h.b16 %v161
    %v646 = vunpack.c.l.b16 %v162
    %v647 = vunpack.c.h.b16 %v162
    %v648 = vunpack.c.l.b16 %v163
    %v649 = vunpack.c.h.b16 %v163
    %v650 = vunpack.c.l.b16 %v164
    %v651 = vunpack.c.h.b16 %v164
    %v652 = vunpack.c.l.b16 %v165
    %v653 = vunpack.c.h.b16 %v165
    %v654 = vunpack.c.l.b16 %v166
    %v655 = vunpack.c.h.b16 %v166
    %v656 = vunpack.c.l.b16 %v167
    %v657 = vunpack.c.h.b16 %v167
    %v658 = vunpack.c.l.b16 %v168
    %v659 = vunpack.c.h.b16 %v168
    %v660 = vunpack.c.l.b16 %v169
    %v661 = vunpack.c.h.b16 %v169
    %v662 = vunpack.c.l.b16 %v170
    %v663 = vunpack.c.h.b16 %v170
    %v664 = vunpack.c.l.b16 %v171
    %v665 = vunpack.c.h.b16 %v171
    %v666 = vunpack.c.l.b16 %v172
    %v667 = vunpack.c.h.b16 %v172
    %v668 = vunpack.c.l.b16 %v173
    %v669 = vunpack.c.h.b16 %v173
    %v670 = vunpack.c.l.b16 %v174
    %v671 = vunpack.c.h.b16 %v174
    %v672 = vunpack.c.l.b16 %v175
    %v673 = vunpack.c.h.b16 %v175
    %v674 = vunpack.c.l.b16 %v176
    %v675 = vunpack.c.h.b16 %v176
    %v676 = vunpack.c.l.b16 %v177
    %v677 = vunpack.c.h.b16 %v177
    %v678 = vunpack.c.l.b16 %v178
    %v679 = vunpack.c.h.b16 %v178
    %v680 = vunpack.c.l.b16 %v179
    %v681 = vunpack.c.h.b16 %v179
    %v682 = vunpack.c.l.b16 %v180
    %v683 = vunpack.c.h.b16 %v180
    %v684 = vunpack.c.l.b16 %v181
    %v685 = vunpack.c.h.b16 %v181
    %v686 = vunpack.c.l.b16 %v182
    %v687 = vunpack.c.h.b16 %v182
    %v688 = vunpack.c.l.b16 %v183
    %v689 = vunpack.c.h.b16 %v183
    %v690 = vunpack.c.l.b16 %v184
    %v691 = vunpack.c.h.b16 %v184
    %v692 = vunpack.c.l.b16 %v185
    %v693 = vunpack.c.h.b16 %v185
    %v694 = vunpack.c.l.b16 %v186
    %v695 = vunpack.c.h.b16 %v186
    %v696 = vunpack.c.l.b16 %v187
    %v697 = vunpack.c.h.b16 %v187
    %v698 = vunpack.c.l.b16 %v188
    %v699 = vunpack.c.h.b16 %v188
    %v700 = vunpack.c.l.b16 %v189
    %v701 = vunpack.c.h.b16 %v189
    %v702 = vunpack.c.l.b16 %v190
    %v703 = vunpack.c.h.b16 %v190
    %v704 = vunpack.c.l.b16 %v191
    %v705 = vunpack.c.h.b16 %v191
    %v706 = vunpack.c.l.b16 %v192
    %v707 = vunpack.c.h.b16 %v192
    %v708 = vunpack.c.l.b16 %v193
    %v709 = vunpack.c.h.b16 %v193
    %v710 = vunpack.c.l.b16 %v194
    %v711 = vunpack.c.h.b16 %v194
    %v712 = vunpack.c.l.b16 %v195
    %v713 = vunpack.c.h.b16 %v195
    %v714 = vunpack.c.l.b16 %v196
    %v715 = vunpack.c.h.b16 %v196
    %v716 = vunpack.c.l.b16 %v197
    %v717 = vunpack.c.h.b16 %v197
    %v718 = vunpack.c.l.b16 %v198
    %v719 = vunpack.c.h.b16 %v198
    %v720 = vunpack.c.l.b16 %v199
    %v721 = vunpack.c.h.b16 %v199
    %v722 = vunpack.c.l.b16 %v200
    %v723 = vunpack.c.h.b16 %v200
    %v724 = vunpack.c.l.b16 %v201
    %v725 = vunpack.c.h.b16 %v201
    %v726 = vunpack.c.l.b16 %v202
    %v727 = vunpack.c.h.b16 %v202
    %v728 = vunpack.c.l.b16 %v203
    %v729 = vunpack.c.h.b16 %v203
    %v730 = vunpack.c.l.b16 %v204
    %v731 = vunpack.c.h.b16 %v204
    %v732 = vunpack.c.l.b16 %v205
    %v733 = vunpack.c.h.b16 %v205
    %v734 = vunpack.c.l.b16 %v206
    %v735 = vunpack.c.h.b16 %v206
    %v736 = vunpack.c.l.b16 %v207
    %v737 = vunpack.c.h.b16 %v207
    %v738 = vunpack.c.l.b16 %v208
    %v739 = vunpack.c.h.b16 %v208
    %v740 = vunpack.c.l.b16 %v209
    %v741 = vunpack.c.h.b16 %v209
    %v742 = vunpack.c.l.b16 %v210
    %v743 = vunpack.c.h.b16 %v210
    %v744 = vunpack.c.l.b16 %v211
    %v745 = vunpack.c.h.b16 %v211
    %v746 = vunpack.c.l.b16 %v212
    %v747 = vunpack.c.h.b16 %v212
    %v748 = vunpack.c.l.b16 %v213
    %v749 = vunpack.c.h.b16 %v213
    %v750 = vunpack.c.l.b16 %v214
    %v751 = vunpack.c.h.b16 %v214
    %v752 = vunpack.c.l.b16 %v215
    %v753 = vunpack.c.h.b16 %v215
    %v754 = vunpack.c.l.b16 %v216
    %v755 = vunpack.c.h.b16 %v216
    %v756 = vunpack.c.l.b16 %v217
    %v757 = vunpack.c.h.b16 %v217
    %v758 = vunpack.c.l.b16 %v218
    %v759 = vunpack.c.h.b16 %v218
    %v760 = vunpack.c.l.b16 %v219
    %v761 = vunpack.c.h.b16 %v219
    %v762 = vunpack.c.l.b16 %v220
    %v763 = vunpack.c.h.b16 %v220
    %v764 = vunpack.c.l.b16 %v221
    %v765 = vunpack.c.h.b16 %v221
    %v766 = vunpack.c.l.b16 %v222
    %v767 = vunpack.c.h.b16 %v222
    %v768 = vunpack.c.l.b16 %v223
    %v769 = vunpack.c.h.b16 %v223
    %v770 = vunpack.c.l.b16 %v224
    %v771 = vunpack.c.h.b16 %v224
    %v772 = vunpack.c.l.b16 %v225
    %v773 = vunpack.c.h.b16 %v225
    %v774 = vunpack.c.l.b16 %v226
    %v775 = vunpack.c.h.b16 %v226
    %v776 = vunpack.c.l.b16 %v227
    %v777 = vunpack.c.h.b16 %v227
    %v778 = vunpack.c.l.b16 %v228
    %v779 = vunpack.c.h.b16 %v228
    %v780 = vunpack.c.l.b16 %v229
    %v781 = vunpack.c.h.b16 %v229
    %v782 = vunpack.c.l.b16 %v230
    %v783 = vunpack.c.h.b16 %v230
    %v784 = vunpack.c.l.b16 %v231
    %v785 = vunpack.c.h.b16 %v231
    %v786 = vunpack.c.l.b16 %v232
    %v787 = vunpack.c.h.b16 %v232
    %v788 = vunpack.c.l.b16 %v233
    %v789 = vunpack.c.h.b16 %v233
    %v790 = vunpack.c.l.b16 %v234
    %v791 = vunpack.c.h.b16 %v234
    %v792 = vunpack.c.l.b16 %v235
    %v793 = vunpack.c.h.b16 %v235
    %v794 = vunpack.c.l.b16 %v236
    %v795 = vunpack.c.h.b16 %v236
    %v796 = vunpack.c.l.b16 %v237
    %v797 = vunpack.c.h.b16 %v237
    %v798 = vunpack.c.l.b16 %v238
    %v799 = vunpack.c.h.b16 %v238
    %v800 = vunpack.c.l.b16 %v239
    %v801 = vunpack.c.h.b16 %v239
    %v802 = vunpack.c.l.b16 %v240
    %v803 = vunpack.c.h.b16 %v240
    %v804 = vunpack.c.l.b16 %v241
    %v805 = vunpack.c.h.b16 %v241
    %v806 = vunpack.c.l.b16 %v242
    %v807 = vunpack.c.h.b16 %v242
    %v808 = vunpack.c.l.b16 %v243
    %v809 = vunpack.c.h.b16 %v243
    %v810 = vunpack.c.l.b16 %v244
    %v811 = vunpack.c.h.b16 %v244
    %v812 = vunpack.c.l.b16 %v245
    %v813 = vunpack.c.h.b16 %v245
    %v814 = vunpack.c.l.b16 %v246
    %v815 = vunpack.c.h.b16 %v246
    %v816 = vunpack.c.l.b16 %v247
    %v817 = vunpack.c.h.b16 %v247
    %v818 = vunpack.c.l.b16 %v248
    %v819 = vunpack.c.h.b16 %v248
    %v820 = vunpack.c.l.b16 %v249
    %v821 = vunpack.c.h.b16 %v249
    %v822 = vunpack.c.l.b16 %v250
    %v823 = vunpack.c.h.b16 %v250
    %v824 = vunpack.c.l.b16 %v251
    %v825 = vunpack.c.h.b16 %v251
    %v826 = vunpack.c.l.b16 %v252
    %v827 = vunpack.c.h.b16 %v252
    %v828 = vunpack.c.l.b16 %v253
    %v829 = vunpack.c.h.b16 %v253
    %v830 = vunpack.c.l.b16 %v254
    %v831 = vunpack.c.h.b16 %v254
    %v832 = vunpack.c.l.b16 %v255
    %v833 = vunpack.c.h.b16 %v255
    %v834 = vunpack.c.l.b16 %v256
    %v835 = vunpack.c.h.b16 %v256
    %v836 = vunpack.c.l.b16 %v257
    %v837 = vunpack.c.h.b16 %v257
    %v838 = vunpack.c.l.b16 %v258
    %v839 = vunpack.c.h.b16 %v258
    %v840 = vunpack.c.l.b16 %v259
    %v841 = vunpack.c.h.b16 %v259
    %v842 = vunpack.c.l.b16 %v260
    %v843 = vunpack.c.h.b16 %v260
    %v844 = vunpack.c.l.b16 %v261
    %v845 = vunpack.c.h.b16 %v261
    %v846 = vunpack.c.l.b16 %v262
    %v847 = vunpack.c.h.b16 %v262
    %v848 = vunpack.c.l.b16 %v263
    %v849 = vunpack.c.h.b16 %v263
    %v850 = vunpack.c.l.b16 %v264
    %v851 = vunpack.c.h.b16 %v264
    %v852 = vunpack.c.l.b16 %v265
    %v853 = vunpack.c.h.b16 %v265
    %v854 = vunpack.c.l.b16 %v266
    %v855 = vunpack.c.h.b16 %v266
    %v856 = vunpack.c.l.b16 %v267
    %v857 = vunpack.c.h.b16 %v267
    %v858 = vunpack.c.l.b16 %v268
    %v859 = vunpack.c.h.b16 %v268
    %v860 = vunpack.c.l.b16 %v269
    %v861 = vunpack.c.h.b16 %v269
    %v862 = vunpack.c.l.b16 %v270
    %v863 = vunpack.c.h.b16 %v270
    %v864 = vunpack.c.l.b16 %v271
    %v865 = vunpack.c.h.b16 %v271
    %v866 = vunpack.c.l.b16 %v272
    %v867 = vunpack.c.h.b16 %v272
    %v868 = vunpack.c.l.b16 %v273
    %v869 = vunpack.c.h.b16 %v273
    %v870 = vunpack.c.l.b16 %v274
    %v871 = vunpack.c.h.b16 %v274
    %v872 = vunpack.c.l.b16 %v275
    %v873 = vunpack.c.h.b16 %v275
    %v874 = vpack.c.b16 %v486, %v482
    %v875 = vpack.c.b16 %v487, %v483
    %v876 = vpack.c.b16 %v488, %v484
    %v877 = vpack.c.b16 %v489, %v485
    %v878 = vpack.c.b16 %v494, %v490
    %v879 = vpack.c.b16 %v495, %v491
    %v880 = vpack.c.b16 %v496, %v492
    %v881 = vpack.c.b16 %v497, %v493
    %v882 = vpack.c.b16 %v502, %v498
    %v883 = vpack.c.b16 %v503, %v499
    %v884 = vpack.c.b16 %v504, %v500
    %v885 = vpack.c.b16 %v505, %v501
    %v886 = vpack.c.b16 %v510, %v506
    %v887 = vpack.c.b16 %v511, %v507
    %v888 = vpack.c.b16 %v512, %v508
    %v889 = vpack.c.b16 %v513, %v509
    %v890 = vpack.c.b16 %v518, %v514
    %v891 = vpack.c.b16 %v519, %v515
    %v892 = vpack.c.b16 %v520, %v516
    %v893 = vpack.c.b16 %v521, %v517
    %v894 = vpack.c.b16 %v526, %v522
    %v895 = vpack.c.b16 %v527, %v523
    %v896 = vpack.c.b16 %v528, %v524
    %v897 = vpack.c.b16 %v529, %v525
    %v898 = vpack.c.b16 %v534, %v530
    %v899 = vpack.c.b16 %v535, %v531
    %v900 = vpack.c.b16 %v536, %v532
    %v901 = vpack.c.b16 %v537, %v533
    %v902 = vpack.c.b16 %v542, %v538
    %v903 = vpack.c.b16 %v543, %v539
    %v904 = vpack.c.b16 %v544, %v540
    %v905 = vpack.c.b16 %v545, %v541
    %v906 = vpack.c.b16 %v550, %v546
    %v907 = vpack.c.b16 %v551, %v547
    %v908 = vpack.c.b16 %v552, %v548
    %v909 = vpack.c.b16 %v553, %v549
    %v910 = vpack.c.b16 %v558, %v554
    %v911 = vpack.c.b16 %v559, %v555
    %v912 = vpack.c.b16 %v560, %v556
    %v913 = vpack.c.b16 %v561, %v557
    %v914 = vpack.c.b16 %v566, %v562
    %v915 = vpack.c.b16 %v567, %v563
    %v916 = vpack.c.b16 %v568, %v564
    %v917 = vpack.c.b16 %v569, %v565
    %v918 = vpack.c.b16 %v574, %v570
    %v919 = vpack.c.b16 %v575, %v571
    %v920 = vpack.c.b16 %v576, %v572
    %v921 = vpack.c.b16 %v577, %v573
    %v922 = vpack.c.b16 %v582, %v578
    %v923 = vpack.c.b16 %v583, %v579
    %v924 = vpack.c.b16 %v584, %v580
    %v925 = vpack.c.b16 %v585, %v581
    %v926 = vpack.c.b16 %v590, %v586
    %v927 = vpack.c.b16 %v591, %v587
    %v928 = vpack.c.b16 %v592, %v588
    %v929 = vpack.c.b16 %v593, %v589
    %v930 = vpack.c.b16 %v598, %v594
    %v931 = vpack.c.b16 %v599, %v595
    %v932 = vpack.c.b16 %v600, %v596
    %v933 = vpack.c.b16 %v601, %v597
    %v934 = vpack.c.b16 %v606, %v602
    %v935 = vpack.c.b16 %v607, %v603
    %v936 = vpack.c.b16 %v608, %v604
    %v937 = vpack.c.b16 %v609, %v605
    %v938 = vpack.c.b16 %v614, %v610
    %v939 = vpack.c.b16 %v615, %v611
    %v940 = vpack.c.b16 %v616, %v612
    %v941 = vpack.c.b16 %v617, %v613
    %v942 = vpack.c.b16 %v622, %v618
    %v943 = vpack.c.b16 %v623, %v619
    %v944 = vpack.c.b16 %v624, %v620
    %v945 = vpack.c.b16 %v625, %v621
    %v946 = vpack.c.b16 %v630, %v626
    %v947 = vpack.c.b16 %v631, %v627
    %v948 = vpack.c.b16 %v632, %v628
    %v949 = vpack.c.b16 %v633, %v629
    %v950 = vpack.c.b16 %v638, %v634
    %v951 = vpack.c.b16 %v639, %v635
    %v952 = vpack.c.b16 %v640, %v636
    %v953 = vpack.c.b16 %v641, %v637
    %v954 = vpack.c.b16 %v646, %v642
    %v955 = vpack.c.b16 %v647, %v643
    %v956 = vpack.c.b16 %v648, %v644
    %v957 = vpack.c.b16 %v649, %v645
    %v958 = vpack.c.b16 %v654, %v650
    %v959 = vpack.c.b16 %v655, %v651
    %v960 = vpack.c.b16 %v656, %v652
    %v961 = vpack.c.b16 %v657, %v653
    %v962 = vpack.c.b16 %v662, %v658
    %v963 = vpack.c.b16 %v663, %v659
    %v964 = vpack.c.b16 %v664, %v660
    %v965 = vpack.c.b16 %v665, %v661
    %v966 = vpack.c.b16 %v670, %v666
    %v967 = vpack.c.b16 %v671, %v667
    %v968 = vpack.c.b16 %v672, %v668
    %v969 = vpack.c.b16 %v673, %v669
    %v970 = vpack.c.b16 %v678, %v674
    %v971 = vpack.c.b16 %v679, %v675
    %v972 = vpack.c.b16 %v680, %v676
    %v973 = vpack.c.b16 %v681, %v677
    %v974 = vpack.c.b16 %v686, %v682
    %v975 = vpack.c.b16 %v687, %v683
    %v976 = vpack.c.b16 %v688, %v684
    %v977 = vpack.c.b16 %v689, %v685
    %v978 = vpack.c.b16 %v694, %v690
    %v979 = vpack.c.b16 %v695, %v691
    %v980 = vpack.c.b16 %v696, %v692
    %v981 = vpack.c.b16 %v697, %v693
    %v982 = vpack.c.b16 %v702, %v698
    %v983 = vpack.c.b16 %v703, %v699
    %v984 = vpack.c.b16 %v704, %v700
    %v985 = vpack.c.b16 %v705, %v701
    %v986 = vpack.c.b16 %v710, %v706
    %v987 = vpack.c.b16 %v711, %v707
    %v988 = vpack.c.b16 %v712, %v708
    %v989 = vpack.c.b16 %v713, %v709
    %v990 = vpack.c.b16 %v718, %v714
    %v991 = vpack.c.b16 %v719, %v715
    %v992 = vpack.c.b16 %v720, %v716
    %v993 = vpack.c.b16 %v721, %v717
    %v994 = vpack.c.b16 %v726, %v722
    %v995 = vpack.c.b16 %v727, %v723
    %v996 = vpack.c.b16 %v728, %v724
    %v997 = vpack.c.b16 %v729, %v725
    %v998 = vpack.c.b16 %v734, %v730
    %v999 = vpack.c.b16 %v735, %v731
    %v1000 = vpack.c.b16 %v736, %v732
    %v1001 = vpack.c.b16 %v737, %v733
    %v1002 = vpack.c.b16 %v742, %v738
    %v1003 = vpack.c.b16 %v743, %v739
    %v1004 = vpack.c.b16 %v744, %v740
    %v1005 = vpack.c.b16 %v745, %v741
    %v1006 = vpack.c.b16 %v750, %v746
    %v1007 = vpack.c.b16 %v751, %v747
    %v1008 = vpack.c.b16 %v752, %v748
    %v1009 = vpack.c.b16 %v753, %v749
    %v1010 = vpack.c.b16 %v758, %v754
    %v1011 = vpack.c.b16 %v759, %v755
    %v1012 = vpack.c.b16 %v760, %v756
    %v1013 = vpack.c.b16 %v761, %v757
    %v1014 = vpack.c.b16 %v766, %v762
    %v1015 = vpack.c.b16 %v767, %v763
    %v1016 = vpack.c.b16 %v768, %v764
    %v1017 = vpack.c.b16 %v769, %v765
    %v1018 = vpack.c.b16 %v774, %v770
    %v1019 = vpack.c.b16 %v775, %v771
    %v1020 = vpack.c.b16 %v776, %v772
    %v1021 = vpack.c.b16 %v777, %v773
    %v1022 = vpack.c.b16 %v782, %v778
    %v1023 = vpack.c.b16 %v783, %v779
    %v1024 = vpack.c.b16 %v784, %v780
    %v1025 = vpack.c.b16 %v785, %v781
    %v1026 = vpack.c.b16 %v790, %v786
    %v1027 = vpack.c.b16 %v791, %v787
    %v1028 = vpack.c.b16 %v792, %v788
    %v1029 = vpack.c.b16 %v793, %v789
    %v1030 = vpack.c.b16 %v798, %v794
    %v1031 = vpack.c.b16 %v799, %v795
    %v1032 = vpack.c.b16 %v800, %v796
    %v1033 = vpack.c.b16 %v801, %v797
    %v1034 = vpack.c.b16 %v806, %v802
    %v1035 = vpack.c.b16 %v807, %v803
    %v1036 = vpack.c.b16 %v808, %v804
    %v1037 = vpack.c.b16 %v809, %v805
    %v1038 = vpack.c.b16 %v814, %v810
    %v1039 = vpack.c.b16 %v815, %v811
    %v1040 = vpack.c.b16 %v816, %v812
    %v1041 = vpack.c.b16 %v817, %v813
    %v1042 = vpack.c.b16 %v822, %v818
    %v1043 = vpack.c.b16 %v823, %v819
    %v1044 = vpack.c.b16 %v824, %v820
    %v1045 = vpack.c.b16 %v825, %v821
    %v1046 = vpack.c.b16 %v830, %v826
    %v1047 = vpack.c.b16 %v831, %v827
    %v1048 = vpack.c.b16 %v832, %v828
    %v1049 = vpack.c.b16 %v833, %v829
    %v1050 = vpack.c.b16 %v838, %v834
    %v1051 = vpack.c.b16 %v839, %v835
    %v1052 = vpack.c.b16 %v840, %v836
    %v1053 = vpack.c.b16 %v841, %v837
    %v1054 = vpack.c.b16 %v846, %v842
    %v1055 = vpack.c.b16 %v847, %v843
    %v1056 = vpack.c.b16 %v848, %v844
    %v1057 = vpack.c.b16 %v849, %v845
    %v1058 = vpack.c.b16 %v854, %v850
    %v1059 = vpack.c.b16 %v855, %v851
    %v1060 = vpack.c.b16 %v856, %v852
    %v1061 = vpack.c.b16 %v857, %v853
    %v1062 = vpack.c.b16 %v862, %v858
    %v1063 = vpack.c.b16 %v863, %v859
    %v1064 = vpack.c.b16 %v864, %v860
    %v1065 = vpack.c.b16 %v865, %v861
    %v1066 = vpack.c.b16 %v870, %v866
    %v1067 = vpack.c.b16 %v871, %v867
    %v1068 = vpack.c.b16 %v872, %v868
    %v1069 = vpack.c.b16 %v873, %v869
    %vm1266 = vcmask 130048
    %v1268 = vsel %vm1266, %v79, 0
    %1270 = vmatpush.bf16.msra.mxu0 %v902
    %1271 = vmatpush.bf16.msra.mxu0 %v898
    %1272 = vmatpush.bf16.msra.mxu0 %v894
    %1273 = vmatpush.bf16.msra.mxu0 %v890
    %1274 = vmatpush.bf16.msra.mxu0 %v886
    %1275 = vmatpush.bf16.msra.mxu0 %v882
    %1276 = vmatpush.bf16.msra.mxu0 %v878
    %1277 = vmatpush.bf16.msra.mxu0 %v874
    %1278 = vmatmul.bf16.gmra.mxu0 %v73
    %v1279 = vpop.f32.mrf.mxu0
    %v1280 = vadd.f32 %v278, %v1279
    %v1281 = vpop.f32.mrf.mxu0
    %v1282 = vadd.f32 %v278, %v1281
    %1283 = vdwg.mxu0
    %1284 = vmatpush.bf16.msra.mxu0 %v934
    %1285 = vmatpush.bf16.msra.mxu0 %v930
    %1286 = vmatpush.bf16.msra.mxu0 %v926
    %1287 = vmatpush.bf16.msra.mxu0 %v922
    %1288 = vmatpush.bf16.msra.mxu0 %v918
    %1289 = vmatpush.bf16.msra.mxu0 %v914
    %1290 = vmatpush.bf16.msra.mxu0 %v910
    %1291 = vmatpush.bf16.msra.mxu0 %v906
    %1292 = vmatmul.bf16.gmra.mxu0 %v74
    %v1293 = vpop.f32.mrf.mxu0
    %v1294 = vadd.f32 %v1280, %v1293
    %v1295 = vpop.f32.mrf.mxu0
    %v1296 = vadd.f32 %v1282, %v1295
    %1297 = vdwg.mxu0
    %1298 = vmatpush.bf16.msra.mxu0 %v966
    %1299 = vmatpush.bf16.msra.mxu0 %v962
    %1300 = vmatpush.bf16.msra.mxu0 %v958
    %1301 = vmatpush.bf16.msra.mxu0 %v954
    %1302 = vmatpush.bf16.msra.mxu0 %v950
    %1303 = vmatpush.bf16.msra.mxu0 %v946
    %1304 = vmatpush.bf16.msra.mxu0 %v942
    %1305 = vmatpush.bf16.msra.mxu0 %v938
    %1306 = vmatmul.bf16.gmra.mxu0 %v75
    %v1307 = vpop.f32.mrf.mxu0
    %v1308 = vadd.f32 %v1294, %v1307
    %v1309 = vpop.f32.mrf.mxu0
    %v1310 = vadd.f32 %v1296, %v1309
    %1311 = vdwg.mxu0
    %1312 = vmatpush.bf16.msra.mxu0 %v998
    %1313 = vmatpush.bf16.msra.mxu0 %v994
    %1314 = vmatpush.bf16.msra.mxu0 %v990
    %1315 = vmatpush.bf16.msra.mxu0 %v986
    %1316 = vmatpush.bf16.msra.mxu0 %v982
    %1317 = vmatpush.bf16.msra.mxu0 %v978
    %1318 = vmatpush.bf16.msra.mxu0 %v974
    %1319 = vmatpush.bf16.msra.mxu0 %v970
    %1320 = vmatmul.bf16.gmra.mxu0 %v76
    %v1321 = vpop.f32.mrf.mxu0
    %v1322 = vadd.f32 %v1308, %v1321
    %v1323 = vpop.f32.mrf.mxu0
    %v1324 = vadd.f32 %v1310, %v1323
    %1325 = vdwg.mxu0
    %1326 = vmatpush.bf16.msra.mxu0 %v1030
    %1327 = vmatpush.bf16.msra.mxu0 %v1026
    %1328 = vmatpush.bf16.msra.mxu0 %v1022
    %1329 = vmatpush.bf16.msra.mxu0 %v1018
    %1330 = vmatpush.bf16.msra.mxu0 %v1014
    %1331 = vmatpush.bf16.msra.mxu0 %v1010
    %1332 = vmatpush.bf16.msra.mxu0 %v1006
    %1333 = vmatpush.bf16.msra.mxu0 %v1002
    %1334 = vmatmul.bf16.gmra.mxu0 %v77
    %v1335 = vpop.f32.mrf.mxu0
    %v1336 = vadd.f32 %v1322, %v1335
    %v1337 = vpop.f32.mrf.mxu0
    %v1338 = vadd.f32 %v1324, %v1337
    %1339 = vdwg.mxu0
    %1340 = vmatpush.bf16.msra.mxu0 %v1062
    %1341 = vmatpush.bf16.msra.mxu0 %v1058
    %1342 = vmatpush.bf16.msra.mxu0 %v1054
    %1343 = vmatpush.bf16.msra.mxu0 %v1050
    %1344 = vmatpush.bf16.msra.mxu0 %v1046
    %1345 = vmatpush.bf16.msra.mxu0 %v1042
    %1346 = vmatpush.bf16.msra.mxu0 %v1038
    %1347 = vmatpush.bf16.msra.mxu0 %v1034
    %1348 = vmatmul.bf16.gmra.mxu0 %v78
    %v1349 = vpop.f32.mrf.mxu0
    %v1350 = vadd.f32 %v1336, %v1349
    %v1351 = vpop.f32.mrf.mxu0
    %v1352 = vadd.f32 %v1338, %v1351
    %1353 = vdwg.mxu0
    %1354 = vmatpush.bf16.msra.mxu0 0
    %1355 = vmatpush.bf16.msra.mxu0 0
    %1356 = vmatpush.bf16.msra.mxu0 0
    %1357 = vmatpush.bf16.msra.mxu0 0
    %1358 = vmatpush.bf16.msra.mxu0 0
    %1359 = vmatpush.bf16.msra.mxu0 0
    %1360 = vmatpush.bf16.msra.mxu0 0
    %1361 = vmatpush.bf16.msra.mxu0 %v1066
    %1362 = vmatmul.bf16.gmra.mxu0 %v1268
    %v1363 = vpop.f32.mrf.mxu0
    %v1364 = vadd.f32 %v1350, %v1363
    %v1365 = vpop.f32.mrf.mxu0
    %v1366 = vadd.f32 %v1352, %v1365
    %1367 = vdwg.mxu0
    %1368 = vmatpush.bf16.msra.mxu0 %v903
    %1369 = vmatpush.bf16.msra.mxu0 %v899
    %1370 = vmatpush.bf16.msra.mxu0 %v895
    %1371 = vmatpush.bf16.msra.mxu0 %v891
    %1372 = vmatpush.bf16.msra.mxu0 %v887
    %1373 = vmatpush.bf16.msra.mxu0 %v883
    %1374 = vmatpush.bf16.msra.mxu0 %v879
    %1375 = vmatpush.bf16.msra.mxu0 %v875
    %1376 = vmatmul.bf16.gmra.mxu0 %v73
    %v1377 = vpop.f32.mrf.mxu0
    %v1378 = vadd.f32 %v279, %v1377
    %v1379 = vpop.f32.mrf.mxu0
    %v1380 = vadd.f32 %v279, %v1379
    %1381 = vdwg.mxu0
    %1382 = vmatpush.bf16.msra.mxu0 %v935
    %1383 = vmatpush.bf16.msra.mxu0 %v931
    %1384 = vmatpush.bf16.msra.mxu0 %v927
    %1385 = vmatpush.bf16.msra.mxu0 %v923
    %1386 = vmatpush.bf16.msra.mxu0 %v919
    %1387 = vmatpush.bf16.msra.mxu0 %v915
    %1388 = vmatpush.bf16.msra.mxu0 %v911
    %1389 = vmatpush.bf16.msra.mxu0 %v907
    %1390 = vmatmul.bf16.gmra.mxu0 %v74
    %v1391 = vpop.f32.mrf.mxu0
    %v1392 = vadd.f32 %v1378, %v1391
    %v1393 = vpop.f32.mrf.mxu0
    %v1394 = vadd.f32 %v1380, %v1393
    %1395 = vdwg.mxu0
    %1396 = vmatpush.bf16.msra.mxu0 %v967
    %1397 = vmatpush.bf16.msra.mxu0 %v963
    %1398 = vmatpush.bf16.msra.mxu0 %v959
    %1399 = vmatpush.bf16.msra.mxu0 %v955
    %1400 = vmatpush.bf16.msra.mxu0 %v951
    %1401 = vmatpush.bf16.msra.mxu0 %v947
    %1402 = vmatpush.bf16.msra.mxu0 %v943
    %1403 = vmatpush.bf16.msra.mxu0 %v939
    %1404 = vmatmul.bf16.gmra.mxu0 %v75
    %v1405 = vpop.f32.mrf.mxu0
    %v1406 = vadd.f32 %v1392, %v1405
    %v1407 = vpop.f32.mrf.mxu0
    %v1408 = vadd.f32 %v1394, %v1407
    %1409 = vdwg.mxu0
    %1410 = vmatpush.bf16.msra.mxu0 %v999
    %1411 = vmatpush.bf16.msra.mxu0 %v995
    %1412 = vmatpush.bf16.msra.mxu0 %v991
    %1413 = vmatpush.bf16.msra.mxu0 %v987
    %1414 = vmatpush.bf16.msra.mxu0 %v983
    %1415 = vmatpush.bf16.msra.mxu0 %v979
    %1416 = vmatpush.bf16.msra.mxu0 %v975
    %1417 = vmatpush.bf16.msra.mxu0 %v971
    %1418 = vmatmul.bf16.gmra.mxu0 %v76
    %v1419 = vpop.f32.mrf.mxu0
    %v1420 = vadd.f32 %v1406, %v1419
    %v1421 = vpop.f32.mrf.mxu0
    %v1422 = vadd.f32 %v1408, %v1421
    %1423 = vdwg.mxu0
    %1424 = vmatpush.bf16.msra.mxu0 %v1031
    %1425 = vmatpush.bf16.msra.mxu0 %v1027
    %1426 = vmatpush.bf16.msra.mxu0 %v1023
    %1427 = vmatpush.bf16.msra.mxu0 %v1019
    %1428 = vmatpush.bf16.msra.mxu0 %v1015
    %1429 = vmatpush.bf16.msra.mxu0 %v1011
    %1430 = vmatpush.bf16.msra.mxu0 %v1007
    %1431 = vmatpush.bf16.msra.mxu0 %v1003
    %1432 = vmatmul.bf16.gmra.mxu0 %v77
    %v1433 = vpop.f32.mrf.mxu0
    %v1434 = vadd.f32 %v1420, %v1433
    %v1435 = vpop.f32.mrf.mxu0
    %v1436 = vadd.f32 %v1422, %v1435
    %1437 = vdwg.mxu0
    %1438 = vmatpush.bf16.msra.mxu0 %v1063
    %1439 = vmatpush.bf16.msra.mxu0 %v1059
    %1440 = vmatpush.bf16.msra.mxu0 %v1055
    %1441 = vmatpush.bf16.msra.mxu0 %v1051
    %1442 = vmatpush.bf16.msra.mxu0 %v1047
    %1443 = vmatpush.bf16.msra.mxu0 %v1043
    %1444 = vmatpush.bf16.msra.mxu0 %v1039
    %1445 = vmatpush.bf16.msra.mxu0 %v1035
    %1446 = vmatmul.bf16.gmra.mxu0 %v78
    %v1447 = vpop.f32.mrf.mxu0
    %v1448 = vadd.f32 %v1434, %v1447
    %v1449 = vpop.f32.mrf.mxu0
    %v1450 = vadd.f32 %v1436, %v1449
    %1451 = vdwg.mxu0
    %1452 = vmatpush.bf16.msra.mxu0 0
    %1453 = vmatpush.bf16.msra.mxu0 0
    %1454 = vmatpush.bf16.msra.mxu0 0
    %1455 = vmatpush.bf16.msra.mxu0 0
    %1456 = vmatpush.bf16.msra.mxu0 0
    %1457 = vmatpush.bf16.msra.mxu0 0
    %1458 = vmatpush.bf16.msra.mxu0 0
    %1459 = vmatpush.bf16.msra.mxu0 %v1067
    %1460 = vmatmul.bf16.gmra.mxu0 %v1268
    %v1461 = vpop.f32.mrf.mxu0
    %v1462 = vadd.f32 %v1448, %v1461
    %v1463 = vpop.f32.mrf.mxu0
    %v1464 = vadd.f32 %v1450, %v1463
    %1465 = vdwg.mxu0
    %1466 = vmatpush.bf16.msra.mxu0 %v904
    %1467 = vmatpush.bf16.msra.mxu0 %v900
    %1468 = vmatpush.bf16.msra.mxu0 %v896
    %1469 = vmatpush.bf16.msra.mxu0 %v892
    %1470 = vmatpush.bf16.msra.mxu0 %v888
    %1471 = vmatpush.bf16.msra.mxu0 %v884
    %1472 = vmatpush.bf16.msra.mxu0 %v880
    %1473 = vmatpush.bf16.msra.mxu0 %v876
    %1474 = vmatmul.bf16.gmra.mxu0 %v73
    %v1475 = vpop.f32.mrf.mxu0
    %v1476 = vadd.f32 %v280, %v1475
    %v1477 = vpop.f32.mrf.mxu0
    %v1478 = vadd.f32 %v280, %v1477
    %1479 = vdwg.mxu0
    %1480 = vmatpush.bf16.msra.mxu0 %v936
    %1481 = vmatpush.bf16.msra.mxu0 %v932
    %1482 = vmatpush.bf16.msra.mxu0 %v928
    %1483 = vmatpush.bf16.msra.mxu0 %v924
    %1484 = vmatpush.bf16.msra.mxu0 %v920
    %1485 = vmatpush.bf16.msra.mxu0 %v916
    %1486 = vmatpush.bf16.msra.mxu0 %v912
    %1487 = vmatpush.bf16.msra.mxu0 %v908
    %1488 = vmatmul.bf16.gmra.mxu0 %v74
    %v1489 = vpop.f32.mrf.mxu0
    %v1490 = vadd.f32 %v1476, %v1489
    %v1491 = vpop.f32.mrf.mxu0
    %v1492 = vadd.f32 %v1478, %v1491
    %1493 = vdwg.mxu0
    %1494 = vmatpush.bf16.msra.mxu0 %v968
    %1495 = vmatpush.bf16.msra.mxu0 %v964
    %1496 = vmatpush.bf16.msra.mxu0 %v960
    %1497 = vmatpush.bf16.msra.mxu0 %v956
    %1498 = vmatpush.bf16.msra.mxu0 %v952
    %1499 = vmatpush.bf16.msra.mxu0 %v948
    %1500 = vmatpush.bf16.msra.mxu0 %v944
    %1501 = vmatpush.bf16.msra.mxu0 %v940
    %1502 = vmatmul.bf16.gmra.mxu0 %v75
    %v1503 = vpop.f32.mrf.mxu0
    %v1504 = vadd.f32 %v1490, %v1503
    %v1505 = vpop.f32.mrf.mxu0
    %v1506 = vadd.f32 %v1492, %v1505
    %1507 = vdwg.mxu0
    %1508 = vmatpush.bf16.msra.mxu0 %v1000
    %1509 = vmatpush.bf16.msra.mxu0 %v996
    %1510 = vmatpush.bf16.msra.mxu0 %v992
    %1511 = vmatpush.bf16.msra.mxu0 %v988
    %1512 = vmatpush.bf16.msra.mxu0 %v984
    %1513 = vmatpush.bf16.msra.mxu0 %v980
    %1514 = vmatpush.bf16.msra.mxu0 %v976
    %1515 = vmatpush.bf16.msra.mxu0 %v972
    %1516 = vmatmul.bf16.gmra.mxu0 %v76
    %v1517 = vpop.f32.mrf.mxu0
    %v1518 = vadd.f32 %v1504, %v1517
    %v1519 = vpop.f32.mrf.mxu0
    %v1520 = vadd.f32 %v1506, %v1519
    %1521 = vdwg.mxu0
    %1522 = vmatpush.bf16.msra.mxu0 %v1032
    %1523 = vmatpush.bf16.msra.mxu0 %v1028
    %1524 = vmatpush.bf16.msra.mxu0 %v1024
    %1525 = vmatpush.bf16.msra.mxu0 %v1020
    %1526 = vmatpush.bf16.msra.mxu0 %v1016
    %1527 = vmatpush.bf16.msra.mxu0 %v1012
    %1528 = vmatpush.bf16.msra.mxu0 %v1008
    %1529 = vmatpush.bf16.msra.mxu0 %v1004
    %1530 = vmatmul.bf16.gmra.mxu0 %v77
    %v1531 = vpop.f32.mrf.mxu0
    %v1532 = vadd.f32 %v1518, %v1531
    %v1533 = vpop.f32.mrf.mxu0
    %v1534 = vadd.f32 %v1520, %v1533
    %1535 = vdwg.mxu0
    %1536 = vmatpush.bf16.msra.mxu0 %v1064
    %1537 = vmatpush.bf16.msra.mxu0 %v1060
    %1538 = vmatpush.bf16.msra.mxu0 %v1056
    %1539 = vmatpush.bf16.msra.mxu0 %v1052
    %1540 = vmatpush.bf16.msra.mxu0 %v1048
    %1541 = vmatpush.bf16.msra.mxu0 %v1044
    %1542 = vmatpush.bf16.msra.mxu0 %v1040
    %1543 = vmatpush.bf16.msra.mxu0 %v1036
    %1544 = vmatmul.bf16.gmra.mxu0 %v78
    %v1545 = vpop.f32.mrf.mxu0
    %v1546 = vadd.f32 %v1532, %v1545
    %v1547 = vpop.f32.mrf.mxu0
    %v1548 = vadd.f32 %v1534, %v1547
    %1549 = vdwg.mxu0
    %1550 = vmatpush.bf16.msra.mxu0 0
    %1551 = vmatpush.bf16.msra.mxu0 0
    %1552 = vmatpush.bf16.msra.mxu0 0
    %1553 = vmatpush.bf16.msra.mxu0 0
    %1554 = vmatpush.bf16.msra.mxu0 0
    %1555 = vmatpush.bf16.msra.mxu0 0
    %1556 = vmatpush.bf16.msra.mxu0 0
    %1557 = vmatpush.bf16.msra.mxu0 %v1068
    %1558 = vmatmul.bf16.gmra.mxu0 %v1268
    %v1559 = vpop.f32.mrf.mxu0
    %v1560 = vadd.f32 %v1546, %v1559
    %v1561 = vpop.f32.mrf.mxu0
    %v1562 = vadd.f32 %v1548, %v1561
    %1563 = vdwg.mxu0
    %1564 = vmatpush.bf16.msra.mxu0 %v905
    %1565 = vmatpush.bf16.msra.mxu0 %v901
    %1566 = vmatpush.bf16.msra.mxu0 %v897
    %1567 = vmatpush.bf16.msra.mxu0 %v893
    %1568 = vmatpush.bf16.msra.mxu0 %v889
    %1569 = vmatpush.bf16.msra.mxu0 %v885
    %1570 = vmatpush.bf16.msra.mxu0 %v881
    %1571 = vmatpush.bf16.msra.mxu0 %v877
    %1572 = vmatmul.bf16.gmra.mxu0 %v73
    %v1573 = vpop.f32.mrf.mxu0
    %v1574 = vadd.f32 %v281, %v1573
    %v1575 = vpop.f32.mrf.mxu0
    %v1576 = vadd.f32 %v281, %v1575
    %1577 = vdwg.mxu0
    %1578 = vmatpush.bf16.msra.mxu0 %v937
    %1579 = vmatpush.bf16.msra.mxu0 %v933
    %1580 = vmatpush.bf16.msra.mxu0 %v929
    %1581 = vmatpush.bf16.msra.mxu0 %v925
    %1582 = vmatpush.bf16.msra.mxu0 %v921
    %1583 = vmatpush.bf16.msra.mxu0 %v917
    %1584 = vmatpush.bf16.msra.mxu0 %v913
    %1585 = vmatpush.bf16.msra.mxu0 %v909
    %1586 = vmatmul.bf16.gmra.mxu0 %v74
    %v1587 = vpop.f32.mrf.mxu0
    %v1588 = vadd.f32 %v1574, %v1587
    %v1589 = vpop.f32.mrf.mxu0
    %v1590 = vadd.f32 %v1576, %v1589
    %1591 = vdwg.mxu0
    %1592 = vmatpush.bf16.msra.mxu0 %v969
    %1593 = vmatpush.bf16.msra.mxu0 %v965
    %1594 = vmatpush.bf16.msra.mxu0 %v961
    %1595 = vmatpush.bf16.msra.mxu0 %v957
    %1596 = vmatpush.bf16.msra.mxu0 %v953
    %1597 = vmatpush.bf16.msra.mxu0 %v949
    %1598 = vmatpush.bf16.msra.mxu0 %v945
    %1599 = vmatpush.bf16.msra.mxu0 %v941
    %1600 = vmatmul.bf16.gmra.mxu0 %v75
    %v1601 = vpop.f32.mrf.mxu0
    %v1602 = vadd.f32 %v1588, %v1601
    %v1603 = vpop.f32.mrf.mxu0
    %v1604 = vadd.f32 %v1590, %v1603
    %1605 = vdwg.mxu0
    %1606 = vmatpush.bf16.msra.mxu0 %v1001
    %1607 = vmatpush.bf16.msra.mxu0 %v997
    %1608 = vmatpush.bf16.msra.mxu0 %v993
    %1609 = vmatpush.bf16.msra.mxu0 %v989
    %1610 = vmatpush.bf16.msra.mxu0 %v985
    %1611 = vmatpush.bf16.msra.mxu0 %v981
    %1612 = vmatpush.bf16.msra.mxu0 %v977
    %1613 = vmatpush.bf16.msra.mxu0 %v973
    %1614 = vmatmul.bf16.gmra.mxu0 %v76
    %v1615 = vpop.f32.mrf.mxu0
    %v1616 = vadd.f32 %v1602, %v1615
    %v1617 = vpop.f32.mrf.mxu0
    %v1618 = vadd.f32 %v1604, %v1617
    %1619 = vdwg.mxu0
    %1620 = vmatpush.bf16.msra.mxu0 %v1033
    %1621 = vmatpush.bf16.msra.mxu0 %v1029
    %1622 = vmatpush.bf16.msra.mxu0 %v1025
    %1623 = vmatpush.bf16.msra.mxu0 %v1021
    %1624 = vmatpush.bf16.msra.mxu0 %v1017
    %1625 = vmatpush.bf16.msra.mxu0 %v1013
    %1626 = vmatpush.bf16.msra.mxu0 %v1009
    %1627 = vmatpush.bf16.msra.mxu0 %v1005
    %1628 = vmatmul.bf16.gmra.mxu0 %v77
    %v1629 = vpop.f32.mrf.mxu0
    %v1630 = vadd.f32 %v1616, %v1629
    %v1631 = vpop.f32.mrf.mxu0
    %v1632 = vadd.f32 %v1618, %v1631
    %1633 = vdwg.mxu0
    %1634 = vmatpush.bf16.msra.mxu0 %v1065
    %1635 = vmatpush.bf16.msra.mxu0 %v1061
    %1636 = vmatpush.bf16.msra.mxu0 %v1057
    %1637 = vmatpush.bf16.msra.mxu0 %v1053
    %1638 = vmatpush.bf16.msra.mxu0 %v1049
    %1639 = vmatpush.bf16.msra.mxu0 %v1045
    %1640 = vmatpush.bf16.msra.mxu0 %v1041
    %1641 = vmatpush.bf16.msra.mxu0 %v1037
    %1642 = vmatmul.bf16.gmra.mxu0 %v78
    %v1643 = vpop.f32.mrf.mxu0
    %v1644 = vadd.f32 %v1630, %v1643
    %v1645 = vpop.f32.mrf.mxu0
    %v1646 = vadd.f32 %v1632, %v1645
    %1647 = vdwg.mxu0
    %1648 = vmatpush.bf16.msra.mxu0 0
    %1649 = vmatpush.bf16.msra.mxu0 0
    %1650 = vmatpush.bf16.msra.mxu0 0
    %1651 = vmatpush.bf16.msra.mxu0 0
    %1652 = vmatpush.bf16.msra.mxu0 0
    %1653 = vmatpush.bf16.msra.mxu0 0
    %1654 = vmatpush.bf16.msra.mxu0 0
    %1655 = vmatpush.bf16.msra.mxu0 %v1069
    %1656 = vmatmul.bf16.gmra.mxu0 %v1268
    %v1657 = vpop.f32.mrf.mxu0
    %v1658 = vadd.f32 %v1644, %v1657
    %v1659 = vpop.f32.mrf.mxu0
    %v1660 = vadd.f32 %v1646, %v1659
    %1661 = vdwg.mxu0
    %v1662 = vmax.f32 %v1364, 0.0
    %v1663 = vmax.f32 %v1462, 0.0
    %v1664 = vmax.f32 %v1560, 0.0
    %v1665 = vmax.f32 %v1658, 0.0
    %v1666 = vmax.f32 %v1366, 0.0
    %v1667 = vmax.f32 %v1464, 0.0
    %v1668 = vmax.f32 %v1562, 0.0
    %v1669 = vmax.f32 %v1660, 0.0
    %v1670 = vpack.c.bf16 %v1666, %v1662
    %v1671 = vpack.c.bf16 %v1667, %v1663
    %v1672 = vpack.c.bf16 %v1668, %v1664
    %v1673 = vpack.c.bf16 %v1669, %v1665
    %v1674 = vld [vmem:[#allocation4] sm:$0xff]
    %v1675 = vld [vmem:[#allocation4 + $0x8] sm:$0xff]
    %v1676 = vld [vmem:[#allocation4 + $0x10] sm:$0xff]
    %v1677 = vld [vmem:[#allocation4 + $0x18] sm:$0xff]
    %v1678 = vld [vmem:[#allocation4 + $0x20] sm:$0xff]
    %v1679 = vld [vmem:[#allocation4 + $0x28] sm:$0xff]
    %v1680 = vld [vmem:[#allocation4 + $0x30] sm:$0xff]
    %v1681 = vld [vmem:[#allocation4 + $0x38] sm:$0xff]
    %v1682 = vld [vmem:[#allocation4 + $0x40] sm:$0xff]
    %v1683 = vld [vmem:[#allocation4 + $0x48] sm:$0xff]
    %v1684 = vld [vmem:[#allocation4 + $0x50] sm:$0xff]
    %v1685 = vld [vmem:[#allocation4 + $0x58] sm:$0xff]
    %v1686 = vld [vmem:[#allocation4 + $0x60] sm:$0xff]
    %v1687 = vld [vmem:[#allocation4 + $0x68] sm:$0xff]
    %v1688 = vld [vmem:[#allocation4 + $0x70] sm:$0xff]
    %v1689 = vld [vmem:[#allocation4 + $0x78] sm:$0xff]
    %v1690 = vld [vmem:[#allocation4 + $0x80] sm:$0xff]
    %v1691 = vld [vmem:[#allocation4 + $0x88] sm:$0xff]
    %v1692 = vld [vmem:[#allocation4 + $0x90] sm:$0xff]
    %v1693 = vld [vmem:[#allocation4 + $0x98] sm:$0xff]
    %v1694 = vld [vmem:[#allocation4 + $0xa0] sm:$0xff]
    %v1695 = vld [vmem:[#allocation4 + $0xa8] sm:$0xff]
    %v1696 = vld [vmem:[#allocation4 + $0xb0] sm:$0xff]
    %v1697 = vld [vmem:[#allocation4 + $0xb8] sm:$0xff]
    %v1698 = vld [vmem:[#allocation4 + $0xc0] sm:$0xff]
    %v1699 = vld [vmem:[#allocation4 + $0xc8] sm:$0xff]
    %v1700 = vld [vmem:[#allocation4 + $0xd0] sm:$0xff]
    %v1701 = vld [vmem:[#allocation4 + $0xd8] sm:$0xff]
    %v1702 = vld [vmem:[#allocation4 + $0xe0] sm:$0xff]
    %v1703 = vld [vmem:[#allocation4 + $0xe8] sm:$0xff]
    %v1704 = vld [vmem:[#allocation4 + $0xf0] sm:$0xff]
    %v1705 = vld [vmem:[#allocation4 + $0xf8] sm:$0xff]
    %v1706 = vld [vmem:[#allocation4 + $0x100] sm:$0xff]
    %v1707 = vld [vmem:[#allocation4 + $0x108] sm:$0xff]
    %v1708 = vld [vmem:[#allocation4 + $0x110] sm:$0xff]
    %v1709 = vld [vmem:[#allocation4 + $0x118] sm:$0xff]
    %v1710 = vld [vmem:[#allocation4 + $0x120] sm:$0xff]
    %v1711 = vld [vmem:[#allocation4 + $0x128] sm:$0xff]
    %v1712 = vld [vmem:[#allocation4 + $0x130] sm:$0xff]
    %v1713 = vld [vmem:[#allocation4 + $0x138] sm:$0xff]
    %v1714 = vld [vmem:[#allocation4 + $0x140] sm:$0xff]
    %v1715 = vld [vmem:[#allocation4 + $0x148] sm:$0xff]
    %v1716 = vld [vmem:[#allocation4 + $0x150] sm:$0xff]
    %v1717 = vld [vmem:[#allocation4 + $0x158] sm:$0xff]
    %v1718 = vld [vmem:[#allocation4 + $0x160] sm:$0xff]
    %v1719 = vld [vmem:[#allocation4 + $0x168] sm:$0xff]
    %v1720 = vld [vmem:[#allocation4 + $0x170] sm:$0xff]
    %v1721 = vld [vmem:[#allocation4 + $0x178] sm:$0xff]
    %v1722 = vld [vmem:[#allocation4 + $0x180] sm:$0xff]
    %v1723 = vld [vmem:[#allocation4 + $0x188] sm:$0xff]
    %v1724 = vld [vmem:[#allocation4 + $0x190] sm:$0xff]
    %v1725 = vld [vmem:[#allocation4 + $0x198] sm:$0xff]
    %v1726 = vld [vmem:[#allocation4 + $0x1a0] sm:$0xff]
    %v1727 = vld [vmem:[#allocation4 + $0x1a8] sm:$0xff]
    %v1728 = vld [vmem:[#allocation4 + $0x1b0] sm:$0xff]
    %v1729 = vld [vmem:[#allocation4 + $0x1b8] sm:$0xff]
    %v1730 = vld [vmem:[#allocation4 + $0x1c0] sm:$0xff]
    %v1731 = vld [vmem:[#allocation4 + $0x1c8] sm:$0xff]
    %v1732 = vld [vmem:[#allocation4 + $0x1d0] sm:$0xff]
    %v1733 = vld [vmem:[#allocation4 + $0x1d8] sm:$0xff]
    %v1734 = vld [vmem:[#allocation4 + $0x1e0] sm:$0xff]
    %v1735 = vld [vmem:[#allocation4 + $0x1e8] sm:$0xff]
    %v1736 = vld [vmem:[#allocation4 + $0x1f0] sm:$0xff]
    %v1737 = vld [vmem:[#allocation4 + $0x1f8] sm:$0xff]
    %v1738 = vld [vmem:[#allocation4 + $0x200] sm:$0xff]
    %v1739 = vld [vmem:[#allocation4 + $0x208] sm:$0xff]
    %v1740 = vld [vmem:[#allocation4 + $0x210] sm:$0xff]
    %v1741 = vld [vmem:[#allocation4 + $0x218] sm:$0xff]
    %v1742 = vld [vmem:[#allocation4 + $0x220] sm:$0xff]
    %v1743 = vld [vmem:[#allocation4 + $0x228] sm:$0xff]
    %v1744 = vld [vmem:[#allocation4 + $0x230] sm:$0xff]
    %v1745 = vld [vmem:[#allocation4 + $0x238] sm:$0xff]
    %v1746 = vld [vmem:[#allocation4 + $0x240] sm:$0xff]
    %v1747 = vld [vmem:[#allocation4 + $0x248] sm:$0xff]
    %v1748 = vld [vmem:[#allocation4 + $0x250] sm:$0xff]
    %v1749 = vld [vmem:[#allocation4 + $0x258] sm:$0xff]
    %v1750 = vld [vmem:[#allocation4 + $0x260] sm:$0xff]
    %v1751 = vld [vmem:[#allocation4 + $0x268] sm:$0xff]
    %v1752 = vld [vmem:[#allocation4 + $0x270] sm:$0xff]
    %v1753 = vld [vmem:[#allocation4 + $0x278] sm:$0xff]
    %v1754 = vld [vmem:[#allocation4 + $0x280] sm:$0xff]
    %v1755 = vld [vmem:[#allocation4 + $0x288] sm:$0xff]
    %v1756 = vld [vmem:[#allocation4 + $0x290] sm:$0xff]
    %v1757 = vld [vmem:[#allocation4 + $0x298] sm:$0xff]
    %v1758 = vld [vmem:[#allocation4 + $0x2a0] sm:$0xff]
    %v1759 = vld [vmem:[#allocation4 + $0x2a8] sm:$0xff]
    %v1760 = vld [vmem:[#allocation4 + $0x2b0] sm:$0xff]
    %v1761 = vld [vmem:[#allocation4 + $0x2b8] sm:$0xff]
    %v1762 = vld [vmem:[#allocation4 + $0x2c0] sm:$0xff]
    %v1763 = vld [vmem:[#allocation4 + $0x2c8] sm:$0xff]
    %v1764 = vld [vmem:[#allocation4 + $0x2d0] sm:$0xff]
    %v1765 = vld [vmem:[#allocation4 + $0x2d8] sm:$0xff]
    %v1766 = vld [vmem:[#allocation4 + $0x2e0] sm:$0xff]
    %v1767 = vld [vmem:[#allocation4 + $0x2e8] sm:$0xff]
    %v1768 = vld [vmem:[#allocation4 + $0x2f0] sm:$0xff]
    %v1769 = vld [vmem:[#allocation4 + $0x2f8] sm:$0xff]
    %v1770 = vld [vmem:[#allocation4 + $0x300] sm:$0xff]
    %v1771 = vld [vmem:[#allocation4 + $0x308] sm:$0xff]
    %v1772 = vld [vmem:[#allocation4 + $0x310] sm:$0xff]
    %v1773 = vld [vmem:[#allocation4 + $0x318] sm:$0xff]
    %v1774 = vld [vmem:[#allocation4 + $0x320] sm:$0xff]
    %v1775 = vld [vmem:[#allocation4 + $0x328] sm:$0xff]
    %v1776 = vld [vmem:[#allocation4 + $0x330] sm:$0xff]
    %v1777 = vld [vmem:[#allocation4 + $0x338] sm:$0xff]
    %v1778 = vld [vmem:[#allocation4 + $0x340] sm:$0xff]
    %v1779 = vld [vmem:[#allocation4 + $0x348] sm:$0xff]
    %v1780 = vld [vmem:[#allocation4 + $0x350] sm:$0xff]
    %v1781 = vld [vmem:[#allocation4 + $0x358] sm:$0xff]
    %v1782 = vld [vmem:[#allocation4 + $0x360] sm:$0xff]
    %v1783 = vld [vmem:[#allocation4 + $0x368] sm:$0xff]
    %v1784 = vld [vmem:[#allocation4 + $0x370] sm:$0xff]
    %v1785 = vld [vmem:[#allocation4 + $0x378] sm:$0xff]
    %v1786 = vld [vmem:[#allocation4 + $0x380] sm:$0xff]
    %v1787 = vld [vmem:[#allocation4 + $0x388] sm:$0xff]
    %v1788 = vld [vmem:[#allocation4 + $0x390] sm:$0xff]
    %v1789 = vld [vmem:[#allocation4 + $0x398] sm:$0xff]
    %v1790 = vld [vmem:[#allocation4 + $0x3a0] sm:$0xff]
    %v1791 = vld [vmem:[#allocation4 + $0x3a8] sm:$0xff]
    %v1792 = vld [vmem:[#allocation4 + $0x3b0] sm:$0xff]
    %v1793 = vld [vmem:[#allocation4 + $0x3b8] sm:$0xff]
    %v1794 = vld [vmem:[#allocation4 + $0x3c0] sm:$0xff]
    %v1795 = vld [vmem:[#allocation4 + $0x3c8] sm:$0xff]
    %v1796 = vld [vmem:[#allocation4 + $0x3d0] sm:$0xff]
    %v1797 = vld [vmem:[#allocation4 + $0x3d8] sm:$0xff]
    %v1798 = vld [vmem:[#allocation4 + $0x3e0] sm:$0xff]
    %v1799 = vld [vmem:[#allocation4 + $0x3e8] sm:$0xff]
    %v1800 = vld [vmem:[#allocation4 + $0x3f0] sm:$0xff]
    %v1801 = vld [vmem:[#allocation4 + $0x3f8] sm:$0xff]
    %v1802 = vld [vmem:[%s4] sm:$0xf]
    %v1804 = vperm.slane %v1802, 0
    %v1805 = vperm.slane %v1802, 1
    %v1806 = vperm.slane %v1802, 2
    %v1807 = vperm.slane %v1802, 3
    %v1940 = vunpack.c.l.b16 %v1674
    %v1941 = vunpack.c.h.b16 %v1674
    %v1942 = vunpack.c.l.b16 %v1675
    %v1943 = vunpack.c.h.b16 %v1675
    %v1944 = vunpack.c.l.b16 %v1676
    %v1945 = vunpack.c.h.b16 %v1676
    %v1946 = vunpack.c.l.b16 %v1677
    %v1947 = vunpack.c.h.b16 %v1677
    %v1948 = vunpack.c.l.b16 %v1678
    %v1949 = vunpack.c.h.b16 %v1678
    %v1950 = vunpack.c.l.b16 %v1679
    %v1951 = vunpack.c.h.b16 %v1679
    %v1952 = vunpack.c.l.b16 %v1680
    %v1953 = vunpack.c.h.b16 %v1680
    %v1954 = vunpack.c.l.b16 %v1681
    %v1955 = vunpack.c.h.b16 %v1681
    %v1956 = vunpack.c.l.b16 %v1682
    %v1957 = vunpack.c.h.b16 %v1682
    %v1958 = vunpack.c.l.b16 %v1683
    %v1959 = vunpack.c.h.b16 %v1683
    %v1960 = vunpack.c.l.b16 %v1684
    %v1961 = vunpack.c.h.b16 %v1684
    %v1962 = vunpack.c.l.b16 %v1685
    %v1963 = vunpack.c.h.b16 %v1685
    %v1964 = vunpack.c.l.b16 %v1686
    %v1965 = vunpack.c.h.b16 %v1686
    %v1966 = vunpack.c.l.b16 %v1687
    %v1967 = vunpack.c.h.b16 %v1687
    %v1968 = vunpack.c.l.b16 %v1688
    %v1969 = vunpack.c.h.b16 %v1688
    %v1970 = vunpack.c.l.b16 %v1689
    %v1971 = vunpack.c.h.b16 %v1689
    %v1972 = vunpack.c.l.b16 %v1690
    %v1973 = vunpack.c.h.b16 %v1690
    %v1974 = vunpack.c.l.b16 %v1691
    %v1975 = vunpack.c.h.b16 %v1691
    %v1976 = vunpack.c.l.b16 %v1692
    %v1977 = vunpack.c.h.b16 %v1692
    %v1978 = vunpack.c.l.b16 %v1693
    %v1979 = vunpack.c.h.b16 %v1693
    %v1980 = vunpack.c.l.b16 %v1694
    %v1981 = vunpack.c.h.b16 %v1694
    %v1982 = vunpack.c.l.b16 %v1695
    %v1983 = vunpack.c.h.b16 %v1695
    %v1984 = vunpack.c.l.b16 %v1696
    %v1985 = vunpack.c.h.b16 %v1696
    %v1986 = vunpack.c.l.b16 %v1697
    %v1987 = vunpack.c.h.b16 %v1697
    %v1988 = vunpack.c.l.b16 %v1698
    %v1989 = vunpack.c.h.b16 %v1698
    %v1990 = vunpack.c.l.b16 %v1699
    %v1991 = vunpack.c.h.b16 %v1699
    %v1992 = vunpack.c.l.b16 %v1700
    %v1993 = vunpack.c.h.b16 %v1700
    %v1994 = vunpack.c.l.b16 %v1701
    %v1995 = vunpack.c.h.b16 %v1701
    %v1996 = vunpack.c.l.b16 %v1702
    %v1997 = vunpack.c.h.b16 %v1702
    %v1998 = vunpack.c.l.b16 %v1703
    %v1999 = vunpack.c.h.b16 %v1703
    %v2000 = vunpack.c.l.b16 %v1704
    %v2001 = vunpack.c.h.b16 %v1704
    %v2002 = vunpack.c.l.b16 %v1705
    %v2003 = vunpack.c.h.b16 %v1705
    %v2004 = vunpack.c.l.b16 %v1706
    %v2005 = vunpack.c.h.b16 %v1706
    %v2006 = vunpack.c.l.b16 %v1707
    %v2007 = vunpack.c.h.b16 %v1707
    %v2008 = vunpack.c.l.b16 %v1708
    %v2009 = vunpack.c.h.b16 %v1708
    %v2010 = vunpack.c.l.b16 %v1709
    %v2011 = vunpack.c.h.b16 %v1709
    %v2012 = vunpack.c.l.b16 %v1710
    %v2013 = vunpack.c.h.b16 %v1710
    %v2014 = vunpack.c.l.b16 %v1711
    %v2015 = vunpack.c.h.b16 %v1711
    %v2016 = vunpack.c.l.b16 %v1712
    %v2017 = vunpack.c.h.b16 %v1712
    %v2018 = vunpack.c.l.b16 %v1713
    %v2019 = vunpack.c.h.b16 %v1713
    %v2020 = vunpack.c.l.b16 %v1714
    %v2021 = vunpack.c.h.b16 %v1714
    %v2022 = vunpack.c.l.b16 %v1715
    %v2023 = vunpack.c.h.b16 %v1715
    %v2024 = vunpack.c.l.b16 %v1716
    %v2025 = vunpack.c.h.b16 %v1716
    %v2026 = vunpack.c.l.b16 %v1717
    %v2027 = vunpack.c.h.b16 %v1717
    %v2028 = vunpack.c.l.b16 %v1718
    %v2029 = vunpack.c.h.b16 %v1718
    %v2030 = vunpack.c.l.b16 %v1719
    %v2031 = vunpack.c.h.b16 %v1719
    %v2032 = vunpack.c.l.b16 %v1720
    %v2033 = vunpack.c.h.b16 %v1720
    %v2034 = vunpack.c.l.b16 %v1721
    %v2035 = vunpack.c.h.b16 %v1721
    %v2036 = vunpack.c.l.b16 %v1722
    %v2037 = vunpack.c.h.b16 %v1722
    %v2038 = vunpack.c.l.b16 %v1723
    %v2039 = vunpack.c.h.b16 %v1723
    %v2040 = vunpack.c.l.b16 %v1724
    %v2041 = vunpack.c.h.b16 %v1724
    %v2042 = vunpack.c.l.b16 %v1725
    %v2043 = vunpack.c.h.b16 %v1725
    %v2044 = vunpack.c.l.b16 %v1726
    %v2045 = vunpack.c.h.b16 %v1726
    %v2046 = vunpack.c.l.b16 %v1727
    %v2047 = vunpack.c.h.b16 %v1727
    %v2048 = vunpack.c.l.b16 %v1728
    %v2049 = vunpack.c.h.b16 %v1728
    %v2050 = vunpack.c.l.b16 %v1729
    %v2051 = vunpack.c.h.b16 %v1729
    %v2052 = vunpack.c.l.b16 %v1730
    %v2053 = vunpack.c.h.b16 %v1730
    %v2054 = vunpack.c.l.b16 %v1731
    %v2055 = vunpack.c.h.b16 %v1731
    %v2056 = vunpack.c.l.b16 %v1732
    %v2057 = vunpack.c.h.b16 %v1732
    %v2058 = vunpack.c.l.b16 %v1733
    %v2059 = vunpack.c.h.b16 %v1733
    %v2060 = vunpack.c.l.b16 %v1734
    %v2061 = vunpack.c.h.b16 %v1734
    %v2062 = vunpack.c.l.b16 %v1735
    %v2063 = vunpack.c.h.b16 %v1735
    %v2064 = vunpack.c.l.b16 %v1736
    %v2065 = vunpack.c.h.b16 %v1736
    %v2066 = vunpack.c.l.b16 %v1737
    %v2067 = vunpack.c.h.b16 %v1737
    %v2068 = vunpack.c.l.b16 %v1738
    %v2069 = vunpack.c.h.b16 %v1738
    %v2070 = vunpack.c.l.b16 %v1739
    %v2071 = vunpack.c.h.b16 %v1739
    %v2072 = vunpack.c.l.b16 %v1740
    %v2073 = vunpack.c.h.b16 %v1740
    %v2074 = vunpack.c.l.b16 %v1741
    %v2075 = vunpack.c.h.b16 %v1741
    %v2076 = vunpack.c.l.b16 %v1742
    %v2077 = vunpack.c.h.b16 %v1742
    %v2078 = vunpack.c.l.b16 %v1743
    %v2079 = vunpack.c.h.b16 %v1743
    %v2080 = vunpack.c.l.b16 %v1744
    %v2081 = vunpack.c.h.b16 %v1744
    %v2082 = vunpack.c.l.b16 %v1745
    %v2083 = vunpack.c.h.b16 %v1745
    %v2084 = vunpack.c.l.b16 %v1746
    %v2085 = vunpack.c.h.b16 %v1746
    %v2086 = vunpack.c.l.b16 %v1747
    %v2087 = vunpack.c.h.b16 %v1747
    %v2088 = vunpack.c.l.b16 %v1748
    %v2089 = vunpack.c.h.b16 %v1748
    %v2090 = vunpack.c.l.b16 %v1749
    %v2091 = vunpack.c.h.b16 %v1749
    %v2092 = vunpack.c.l.b16 %v1750
    %v2093 = vunpack.c.h.b16 %v1750
    %v2094 = vunpack.c.l.b16 %v1751
    %v2095 = vunpack.c.h.b16 %v1751
    %v2096 = vunpack.c.l.b16 %v1752
    %v2097 = vunpack.c.h.b16 %v1752
    %v2098 = vunpack.c.l.b16 %v1753
    %v2099 = vunpack.c.h.b16 %v1753
    %v2100 = vunpack.c.l.b16 %v1754
    %v2101 = vunpack.c.h.b16 %v1754
    %v2102 = vunpack.c.l.b16 %v1755
    %v2103 = vunpack.c.h.b16 %v1755
    %v2104 = vunpack.c.l.b16 %v1756
    %v2105 = vunpack.c.h.b16 %v1756
    %v2106 = vunpack.c.l.b16 %v1757
    %v2107 = vunpack.c.h.b16 %v1757
    %v2108 = vunpack.c.l.b16 %v1758
    %v2109 = vunpack.c.h.b16 %v1758
    %v2110 = vunpack.c.l.b16 %v1759
    %v2111 = vunpack.c.h.b16 %v1759
    %v2112 = vunpack.c.l.b16 %v1760
    %v2113 = vunpack.c.h.b16 %v1760
    %v2114 = vunpack.c.l.b16 %v1761
    %v2115 = vunpack.c.h.b16 %v1761
    %v2116 = vunpack.c.l.b16 %v1762
    %v2117 = vunpack.c.h.b16 %v1762
    %v2118 = vunpack.c.l.b16 %v1763
    %v2119 = vunpack.c.h.b16 %v1763
    %v2120 = vunpack.c.l.b16 %v1764
    %v2121 = vunpack.c.h.b16 %v1764
    %v2122 = vunpack.c.l.b16 %v1765
    %v2123 = vunpack.c.h.b16 %v1765
    %v2124 = vunpack.c.l.b16 %v1766
    %v2125 = vunpack.c.h.b16 %v1766
    %v2126 = vunpack.c.l.b16 %v1767
    %v2127 = vunpack.c.h.b16 %v1767
    %v2128 = vunpack.c.l.b16 %v1768
    %v2129 = vunpack.c.h.b16 %v1768
    %v2130 = vunpack.c.l.b16 %v1769
    %v2131 = vunpack.c.h.b16 %v1769
    %v2132 = vunpack.c.l.b16 %v1770
    %v2133 = vunpack.c.h.b16 %v1770
    %v2134 = vunpack.c.l.b16 %v1771
    %v2135 = vunpack.c.h.b16 %v1771
    %v2136 = vunpack.c.l.b16 %v1772
    %v2137 = vunpack.c.h.b16 %v1772
    %v2138 = vunpack.c.l.b16 %v1773
    %v2139 = vunpack.c.h.b16 %v1773
    %v2140 = vunpack.c.l.b16 %v1774
    %v2141 = vunpack.c.h.b16 %v1774
    %v2142 = vunpack.c.l.b16 %v1775
    %v2143 = vunpack.c.h.b16 %v1775
    %v2144 = vunpack.c.l.b16 %v1776
    %v2145 = vunpack.c.h.b16 %v1776
    %v2146 = vunpack.c.l.b16 %v1777
    %v2147 = vunpack.c.h.b16 %v1777
    %v2148 = vunpack.c.l.b16 %v1778
    %v2149 = vunpack.c.h.b16 %v1778
    %v2150 = vunpack.c.l.b16 %v1779
    %v2151 = vunpack.c.h.b16 %v1779
    %v2152 = vunpack.c.l.b16 %v1780
    %v2153 = vunpack.c.h.b16 %v1780
    %v2154 = vunpack.c.l.b16 %v1781
    %v2155 = vunpack.c.h.b16 %v1781
    %v2156 = vunpack.c.l.b16 %v1782
    %v2157 = vunpack.c.h.b16 %v1782
    %v2158 = vunpack.c.l.b16 %v1783
    %v2159 = vunpack.c.h.b16 %v1783
    %v2160 = vunpack.c.l.b16 %v1784
    %v2161 = vunpack.c.h.b16 %v1784
    %v2162 = vunpack.c.l.b16 %v1785
    %v2163 = vunpack.c.h.b16 %v1785
    %v2164 = vunpack.c.l.b16 %v1786
    %v2165 = vunpack.c.h.b16 %v1786
    %v2166 = vunpack.c.l.b16 %v1787
    %v2167 = vunpack.c.h.b16 %v1787
    %v2168 = vunpack.c.l.b16 %v1788
    %v2169 = vunpack.c.h.b16 %v1788
    %v2170 = vunpack.c.l.b16 %v1789
    %v2171 = vunpack.c.h.b16 %v1789
    %v2172 = vunpack.c.l.b16 %v1790
    %v2173 = vunpack.c.h.b16 %v1790
    %v2174 = vunpack.c.l.b16 %v1791
    %v2175 = vunpack.c.h.b16 %v1791
    %v2176 = vunpack.c.l.b16 %v1792
    %v2177 = vunpack.c.h.b16 %v1792
    %v2178 = vunpack.c.l.b16 %v1793
    %v2179 = vunpack.c.h.b16 %v1793
    %v2180 = vunpack.c.l.b16 %v1794
    %v2181 = vunpack.c.h.b16 %v1794
    %v2182 = vunpack.c.l.b16 %v1795
    %v2183 = vunpack.c.h.b16 %v1795
    %v2184 = vunpack.c.l.b16 %v1796
    %v2185 = vunpack.c.h.b16 %v1796
    %v2186 = vunpack.c.l.b16 %v1797
    %v2187 = vunpack.c.h.b16 %v1797
    %v2188 = vunpack.c.l.b16 %v1798
    %v2189 = vunpack.c.h.b16 %v1798
    %v2190 = vunpack.c.l.b16 %v1799
    %v2191 = vunpack.c.h.b16 %v1799
    %v2192 = vunpack.c.l.b16 %v1800
    %v2193 = vunpack.c.h.b16 %v1800
    %v2194 = vunpack.c.l.b16 %v1801
    %v2195 = vunpack.c.h.b16 %v1801
    %v2196 = vpack.c.b16 %v1944, %v1940
    %v2197 = vpack.c.b16 %v1945, %v1941
    %v2198 = vpack.c.b16 %v1946, %v1942
    %v2199 = vpack.c.b16 %v1947, %v1943
    %v2200 = vpack.c.b16 %v1952, %v1948
    %v2201 = vpack.c.b16 %v1953, %v1949
    %v2202 = vpack.c.b16 %v1954, %v1950
    %v2203 = vpack.c.b16 %v1955, %v1951
    %v2204 = vpack.c.b16 %v1960, %v1956
    %v2205 = vpack.c.b16 %v1961, %v1957
    %v2206 = vpack.c.b16 %v1962, %v1958
    %v2207 = vpack.c.b16 %v1963, %v1959
    %v2208 = vpack.c.b16 %v1968, %v1964
    %v2209 = vpack.c.b16 %v1969, %v1965
    %v2210 = vpack.c.b16 %v1970, %v1966
    %v2211 = vpack.c.b16 %v1971, %v1967
    %v2212 = vpack.c.b16 %v1976, %v1972
    %v2213 = vpack.c.b16 %v1977, %v1973
    %v2214 = vpack.c.b16 %v1978, %v1974
    %v2215 = vpack.c.b16 %v1979, %v1975
    %v2216 = vpack.c.b16 %v1984, %v1980
    %v2217 = vpack.c.b16 %v1985, %v1981
    %v2218 = vpack.c.b16 %v1986, %v1982
    %v2219 = vpack.c.b16 %v1987, %v1983
    %v2220 = vpack.c.b16 %v1992, %v1988
    %v2221 = vpack.c.b16 %v1993, %v1989
    %v2222 = vpack.c.b16 %v1994, %v1990
    %v2223 = vpack.c.b16 %v1995, %v1991
    %v2224 = vpack.c.b16 %v2000, %v1996
    %v2225 = vpack.c.b16 %v2001, %v1997
    %v2226 = vpack.c.b16 %v2002, %v1998
    %v2227 = vpack.c.b16 %v2003, %v1999
    %v2228 = vpack.c.b16 %v2008, %v2004
    %v2229 = vpack.c.b16 %v2009, %v2005
    %v2230 = vpack.c.b16 %v2010, %v2006
    %v2231 = vpack.c.b16 %v2011, %v2007
    %v2232 = vpack.c.b16 %v2016, %v2012
    %v2233 = vpack.c.b16 %v2017, %v2013
    %v2234 = vpack.c.b16 %v2018, %v2014
    %v2235 = vpack.c.b16 %v2019, %v2015
    %v2236 = vpack.c.b16 %v2024, %v2020
    %v2237 = vpack.c.b16 %v2025, %v2021
    %v2238 = vpack.c.b16 %v2026, %v2022
    %v2239 = vpack.c.b16 %v2027, %v2023
    %v2240 = vpack.c.b16 %v2032, %v2028
    %v2241 = vpack.c.b16 %v2033, %v2029
    %v2242 = vpack.c.b16 %v2034, %v2030
    %v2243 = vpack.c.b16 %v2035, %v2031
    %v2244 = vpack.c.b16 %v2040, %v2036
    %v2245 = vpack.c.b16 %v2041, %v2037
    %v2246 = vpack.c.b16 %v2042, %v2038
    %v2247 = vpack.c.b16 %v2043, %v2039
    %v2248 = vpack.c.b16 %v2048, %v2044
    %v2249 = vpack.c.b16 %v2049, %v2045
    %v2250 = vpack.c.b16 %v2050, %v2046
    %v2251 = vpack.c.b16 %v2051, %v2047
    %v2252 = vpack.c.b16 %v2056, %v2052
    %v2253 = vpack.c.b16 %v2057, %v2053
    %v2254 = vpack.c.b16 %v2058, %v2054
    %v2255 = vpack.c.b16 %v2059, %v2055
    %v2256 = vpack.c.b16 %v2064, %v2060
    %v2257 = vpack.c.b16 %v2065, %v2061
    %v2258 = vpack.c.b16 %v2066, %v2062
    %v2259 = vpack.c.b16 %v2067, %v2063
    %v2260 = vpack.c.b16 %v2072, %v2068
    %v2261 = vpack.c.b16 %v2073, %v2069
    %v2262 = vpack.c.b16 %v2074, %v2070
    %v2263 = vpack.c.b16 %v2075, %v2071
    %v2264 = vpack.c.b16 %v2080, %v2076
    %v2265 = vpack.c.b16 %v2081, %v2077
    %v2266 = vpack.c.b16 %v2082, %v2078
    %v2267 = vpack.c.b16 %v2083, %v2079
    %v2268 = vpack.c.b16 %v2088, %v2084
    %v2269 = vpack.c.b16 %v2089, %v2085
    %v2270 = vpack.c.b16 %v2090, %v2086
    %v2271 = vpack.c.b16 %v2091, %v2087
    %v2272 = vpack.c.b16 %v2096, %v2092
    %v2273 = vpack.c.b16 %v2097, %v2093
    %v2274 = vpack.c.b16 %v2098, %v2094
    %v2275 = vpack.c.b16 %v2099, %v2095
    %v2276 = vpack.c.b16 %v2104, %v2100
    %v2277 = vpack.c.b16 %v2105, %v2101
    %v2278 = vpack.c.b16 %v2106, %v2102
    %v2279 = vpack.c.b16 %v2107, %v2103
    %v2280 = vpack.c.b16 %v2112, %v2108
    %v2281 = vpack.c.b16 %v2113, %v2109
    %v2282 = vpack.c.b16 %v2114, %v2110
    %v2283 = vpack.c.b16 %v2115, %v2111
    %v2284 = vpack.c.b16 %v2120, %v2116
    %v2285 = vpack.c.b16 %v2121, %v2117
    %v2286 = vpack.c.b16 %v2122, %v2118
    %v2287 = vpack.c.b16 %v2123, %v2119
    %v2288 = vpack.c.b16 %v2128, %v2124
    %v2289 = vpack.c.b16 %v2129, %v2125
    %v2290 = vpack.c.b16 %v2130, %v2126
    %v2291 = vpack.c.b16 %v2131, %v2127
    %v2292 = vpack.c.b16 %v2136, %v2132
    %v2293 = vpack.c.b16 %v2137, %v2133
    %v2294 = vpack.c.b16 %v2138, %v2134
    %v2295 = vpack.c.b16 %v2139, %v2135
    %v2296 = vpack.c.b16 %v2144, %v2140
    %v2297 = vpack.c.b16 %v2145, %v2141
    %v2298 = vpack.c.b16 %v2146, %v2142
    %v2299 = vpack.c.b16 %v2147, %v2143
    %v2300 = vpack.c.b16 %v2152, %v2148
    %v2301 = vpack.c.b16 %v2153, %v2149
    %v2302 = vpack.c.b16 %v2154, %v2150
    %v2303 = vpack.c.b16 %v2155, %v2151
    %v2304 = vpack.c.b16 %v2160, %v2156
    %v2305 = vpack.c.b16 %v2161, %v2157
    %v2306 = vpack.c.b16 %v2162, %v2158
    %v2307 = vpack.c.b16 %v2163, %v2159
    %v2308 = vpack.c.b16 %v2168, %v2164
    %v2309 = vpack.c.b16 %v2169, %v2165
    %v2310 = vpack.c.b16 %v2170, %v2166
    %v2311 = vpack.c.b16 %v2171, %v2167
    %v2312 = vpack.c.b16 %v2176, %v2172
    %v2313 = vpack.c.b16 %v2177, %v2173
    %v2314 = vpack.c.b16 %v2178, %v2174
    %v2315 = vpack.c.b16 %v2179, %v2175
    %v2316 = vpack.c.b16 %v2184, %v2180
    %v2317 = vpack.c.b16 %v2185, %v2181
    %v2318 = vpack.c.b16 %v2186, %v2182
    %v2319 = vpack.c.b16 %v2187, %v2183
    %v2320 = vpack.c.b16 %v2192, %v2188
    %v2321 = vpack.c.b16 %v2193, %v2189
    %v2322 = vpack.c.b16 %v2194, %v2190
    %v2323 = vpack.c.b16 %v2195, %v2191
    %2452 = vmatpush.bf16.msra.mxu0 %v2224
    %2453 = vmatpush.bf16.msra.mxu0 %v2220
    %2454 = vmatpush.bf16.msra.mxu0 %v2216
    %2455 = vmatpush.bf16.msra.mxu0 %v2212
    %2456 = vmatpush.bf16.msra.mxu0 %v2208
    %2457 = vmatpush.bf16.msra.mxu0 %v2204
    %2458 = vmatpush.bf16.msra.mxu0 %v2200
    %2459 = vmatpush.bf16.msra.mxu0 %v2196
    %2460 = vmatmul.bf16.gmra.mxu0 %v1670
    %v2461 = vpop.f32.mrf.mxu0
    %v2462 = vadd.f32 %v1804, %v2461
    %v2463 = vpop.f32.mrf.mxu0
    %v2464 = vadd.f32 %v1804, %v2463
    %2465 = vdwg.mxu0
    %2466 = vmatpush.bf16.msra.mxu0 %v2256
    %2467 = vmatpush.bf16.msra.mxu0 %v2252
    %2468 = vmatpush.bf16.msra.mxu0 %v2248
    %2469 = vmatpush.bf16.msra.mxu0 %v2244
    %2470 = vmatpush.bf16.msra.mxu0 %v2240
    %2471 = vmatpush.bf16.msra.mxu0 %v2236
    %2472 = vmatpush.bf16.msra.mxu0 %v2232
    %2473 = vmatpush.bf16.msra.mxu0 %v2228
    %2474 = vmatmul.bf16.gmra.mxu0 %v1671
    %v2475 = vpop.f32.mrf.mxu0
    %v2476 = vadd.f32 %v2462, %v2475
    %v2477 = vpop.f32.mrf.mxu0
    %v2478 = vadd.f32 %v2464, %v2477
    %2479 = vdwg.mxu0
    %2480 = vmatpush.bf16.msra.mxu0 %v2288
    %2481 = vmatpush.bf16.msra.mxu0 %v2284
    %2482 = vmatpush.bf16.msra.mxu0 %v2280
    %2483 = vmatpush.bf16.msra.mxu0 %v2276
    %2484 = vmatpush.bf16.msra.mxu0 %v2272
    %2485 = vmatpush.bf16.msra.mxu0 %v2268
    %2486 = vmatpush.bf16.msra.mxu0 %v2264
    %2487 = vmatpush.bf16.msra.mxu0 %v2260
    %2488 = vmatmul.bf16.gmra.mxu0 %v1672
    %v2489 = vpop.f32.mrf.mxu0
    %v2490 = vadd.f32 %v2476, %v2489
    %v2491 = vpop.f32.mrf.mxu0
    %v2492 = vadd.f32 %v2478, %v2491
    %2493 = vdwg.mxu0
    %2494 = vmatpush.bf16.msra.mxu0 %v2320
    %2495 = vmatpush.bf16.msra.mxu0 %v2316
    %2496 = vmatpush.bf16.msra.mxu0 %v2312
    %2497 = vmatpush.bf16.msra.mxu0 %v2308
    %2498 = vmatpush.bf16.msra.mxu0 %v2304
    %2499 = vmatpush.bf16.msra.mxu0 %v2300
    %2500 = vmatpush.bf16.msra.mxu0 %v2296
    %2501 = vmatpush.bf16.msra.mxu0 %v2292
    %2502 = vmatmul.bf16.gmra.mxu0 %v1673
    %v2503 = vpop.f32.mrf.mxu0
    %v2504 = vadd.f32 %v2490, %v2503
    %v2505 = vpop.f32.mrf.mxu0
    %v2506 = vadd.f32 %v2492, %v2505
    %2507 = vdwg.mxu0
    %2508 = vmatpush.bf16.msra.mxu0 %v2225
    %2509 = vmatpush.bf16.msra.mxu0 %v2221
    %2510 = vmatpush.bf16.msra.mxu0 %v2217
    %2511 = vmatpush.bf16.msra.mxu0 %v2213
    %2512 = vmatpush.bf16.msra.mxu0 %v2209
    %2513 = vmatpush.bf16.msra.mxu0 %v2205
    %2514 = vmatpush.bf16.msra.mxu0 %v2201
    %2515 = vmatpush.bf16.msra.mxu0 %v2197
    %2516 = vmatmul.bf16.gmra.mxu0 %v1670
    %v2517 = vpop.f32.mrf.mxu0
    %v2518 = vadd.f32 %v1805, %v2517
    %v2519 = vpop.f32.mrf.mxu0
    %v2520 = vadd.f32 %v1805, %v2519
    %2521 = vdwg.mxu0
    %2522 = vmatpush.bf16.msra.mxu0 %v2257
    %2523 = vmatpush.bf16.msra.mxu0 %v2253
    %2524 = vmatpush.bf16.msra.mxu0 %v2249
    %2525 = vmatpush.bf16.msra.mxu0 %v2245
    %2526 = vmatpush.bf16.msra.mxu0 %v2241
    %2527 = vmatpush.bf16.msra.mxu0 %v2237
    %2528 = vmatpush.bf16.msra.mxu0 %v2233
    %2529 = vmatpush.bf16.msra.mxu0 %v2229
    %2530 = vmatmul.bf16.gmra.mxu0 %v1671
    %v2531 = vpop.f32.mrf.mxu0
    %v2532 = vadd.f32 %v2518, %v2531
    %v2533 = vpop.f32.mrf.mxu0
    %v2534 = vadd.f32 %v2520, %v2533
    %2535 = vdwg.mxu0
    %2536 = vmatpush.bf16.msra.mxu0 %v2289
    %2537 = vmatpush.bf16.msra.mxu0 %v2285
    %2538 = vmatpush.bf16.msra.mxu0 %v2281
    %2539 = vmatpush.bf16.msra.mxu0 %v2277
    %2540 = vmatpush.bf16.msra.mxu0 %v2273
    %2541 = vmatpush.bf16.msra.mxu0 %v2269
    %2542 = vmatpush.bf16.msra.mxu0 %v2265
    %2543 = vmatpush.bf16.msra.mxu0 %v2261
    %2544 = vmatmul.bf16.gmra.mxu0 %v1672
    %v2545 = vpop.f32.mrf.mxu0
    %v2546 = vadd.f32 %v2532, %v2545
    %v2547 = vpop.f32.mrf.mxu0
    %v2548 = vadd.f32 %v2534, %v2547
    %2549 = vdwg.mxu0
    %2550 = vmatpush.bf16.msra.mxu0 %v2321
    %2551 = vmatpush.bf16.msra.mxu0 %v2317
    %2552 = vmatpush.bf16.msra.mxu0 %v2313
    %2553 = vmatpush.bf16.msra.mxu0 %v2309
    %2554 = vmatpush.bf16.msra.mxu0 %v2305
    %2555 = vmatpush.bf16.msra.mxu0 %v2301
    %2556 = vmatpush.bf16.msra.mxu0 %v2297
    %2557 = vmatpush.bf16.msra.mxu0 %v2293
    %2558 = vmatmul.bf16.gmra.mxu0 %v1673
    %v2559 = vpop.f32.mrf.mxu0
    %v2560 = vadd.f32 %v2546, %v2559
    %v2561 = vpop.f32.mrf.mxu0
    %v2562 = vadd.f32 %v2548, %v2561
    %2563 = vdwg.mxu0
    %2564 = vmatpush.bf16.msra.mxu0 %v2226
    %2565 = vmatpush.bf16.msra.mxu0 %v2222
    %2566 = vmatpush.bf16.msra.mxu0 %v2218
    %2567 = vmatpush.bf16.msra.mxu0 %v2214
    %2568 = vmatpush.bf16.msra.mxu0 %v2210
    %2569 = vmatpush.bf16.msra.mxu0 %v2206
    %2570 = vmatpush.bf16.msra.mxu0 %v2202
    %2571 = vmatpush.bf16.msra.mxu0 %v2198
    %2572 = vmatmul.bf16.gmra.mxu0 %v1670
    %v2573 = vpop.f32.mrf.mxu0
    %v2574 = vadd.f32 %v1806, %v2573
    %v2575 = vpop.f32.mrf.mxu0
    %v2576 = vadd.f32 %v1806, %v2575
    %2577 = vdwg.mxu0
    %2578 = vmatpush.bf16.msra.mxu0 %v2258
    %2579 = vmatpush.bf16.msra.mxu0 %v2254
    %2580 = vmatpush.bf16.msra.mxu0 %v2250
    %2581 = vmatpush.bf16.msra.mxu0 %v2246
    %2582 = vmatpush.bf16.msra.mxu0 %v2242
    %2583 = vmatpush.bf16.msra.mxu0 %v2238
    %2584 = vmatpush.bf16.msra.mxu0 %v2234
    %2585 = vmatpush.bf16.msra.mxu0 %v2230
    %2586 = vmatmul.bf16.gmra.mxu0 %v1671
    %v2587 = vpop.f32.mrf.mxu0
    %v2588 = vadd.f32 %v2574, %v2587
    %v2589 = vpop.f32.mrf.mxu0
    %v2590 = vadd.f32 %v2576, %v2589
    %2591 = vdwg.mxu0
    %2592 = vmatpush.bf16.msra.mxu0 %v2290
    %2593 = vmatpush.bf16.msra.mxu0 %v2286
    %2594 = vmatpush.bf16.msra.mxu0 %v2282
    %2595 = vmatpush.bf16.msra.mxu0 %v2278
    %2596 = vmatpush.bf16.msra.mxu0 %v2274
    %2597 = vmatpush.bf16.msra.mxu0 %v2270
    %2598 = vmatpush.bf16.msra.mxu0 %v2266
    %2599 = vmatpush.bf16.msra.mxu0 %v2262
    %2600 = vmatmul.bf16.gmra.mxu0 %v1672
    %v2601 = vpop.f32.mrf.mxu0
    %v2602 = vadd.f32 %v2588, %v2601
    %v2603 = vpop.f32.mrf.mxu0
    %v2604 = vadd.f32 %v2590, %v2603
    %2605 = vdwg.mxu0
    %2606 = vmatpush.bf16.msra.mxu0 %v2322
    %2607 = vmatpush.bf16.msra.mxu0 %v2318
    %2608 = vmatpush.bf16.msra.mxu0 %v2314
    %2609 = vmatpush.bf16.msra.mxu0 %v2310
    %2610 = vmatpush.bf16.msra.mxu0 %v2306
    %2611 = vmatpush.bf16.msra.mxu0 %v2302
    %2612 = vmatpush.bf16.msra.mxu0 %v2298
    %2613 = vmatpush.bf16.msra.mxu0 %v2294
    %2614 = vmatmul.bf16.gmra.mxu0 %v1673
    %v2615 = vpop.f32.mrf.mxu0
    %v2616 = vadd.f32 %v2602, %v2615
    %v2617 = vpop.f32.mrf.mxu0
    %v2618 = vadd.f32 %v2604, %v2617
    %2619 = vdwg.mxu0
    %2620 = vmatpush.bf16.msra.mxu0 %v2227
    %2621 = vmatpush.bf16.msra.mxu0 %v2223
    %2622 = vmatpush.bf16.msra.mxu0 %v2219
    %2623 = vmatpush.bf16.msra.mxu0 %v2215
    %2624 = vmatpush.bf16.msra.mxu0 %v2211
    %2625 = vmatpush.bf16.msra.mxu0 %v2207
    %2626 = vmatpush.bf16.msra.mxu0 %v2203
    %2627 = vmatpush.bf16.msra.mxu0 %v2199
    %2628 = vmatmul.bf16.gmra.mxu0 %v1670
    %v2629 = vpop.f32.mrf.mxu0
    %v2630 = vadd.f32 %v1807, %v2629
    %v2631 = vpop.f32.mrf.mxu0
    %v2632 = vadd.f32 %v1807, %v2631
    %2633 = vdwg.mxu0
    %2634 = vmatpush.bf16.msra.mxu0 %v2259
    %2635 = vmatpush.bf16.msra.mxu0 %v2255
    %2636 = vmatpush.bf16.msra.mxu0 %v2251
    %2637 = vmatpush.bf16.msra.mxu0 %v2247
    %2638 = vmatpush.bf16.msra.mxu0 %v2243
    %2639 = vmatpush.bf16.msra.mxu0 %v2239
    %2640 = vmatpush.bf16.msra.mxu0 %v2235
    %2641 = vmatpush.bf16.msra.mxu0 %v2231
    %2642 = vmatmul.bf16.gmra.mxu0 %v1671
    %v2643 = vpop.f32.mrf.mxu0
    %v2644 = vadd.f32 %v2630, %v2643
    %v2645 = vpop.f32.mrf.mxu0
    %v2646 = vadd.f32 %v2632, %v2645
    %2647 = vdwg.mxu0
    %2648 = vmatpush.bf16.msra.mxu0 %v2291
    %2649 = vmatpush.bf16.msra.mxu0 %v2287
    %2650 = vmatpush.bf16.msra.mxu0 %v2283
    %2651 = vmatpush.bf16.msra.mxu0 %v2279
    %2652 = vmatpush.bf16.msra.mxu0 %v2275
    %2653 = vmatpush.bf16.msra.mxu0 %v2271
    %2654 = vmatpush.bf16.msra.mxu0 %v2267
    %2655 = vmatpush.bf16.msra.mxu0 %v2263
    %2656 = vmatmul.bf16.gmra.mxu0 %v1672
    %v2657 = vpop.f32.mrf.mxu0
    %v2658 = vadd.f32 %v2644, %v2657
    %v2659 = vpop.f32.mrf.mxu0
    %v2660 = vadd.f32 %v2646, %v2659
    %2661 = vdwg.mxu0
    %2662 = vmatpush.bf16.msra.mxu0 %v2323
    %2663 = vmatpush.bf16.msra.mxu0 %v2319
    %2664 = vmatpush.bf16.msra.mxu0 %v2315
    %2665 = vmatpush.bf16.msra.mxu0 %v2311
    %2666 = vmatpush.bf16.msra.mxu0 %v2307
    %2667 = vmatpush.bf16.msra.mxu0 %v2303
    %2668 = vmatpush.bf16.msra.mxu0 %v2299
    %2669 = vmatpush.bf16.msra.mxu0 %v2295
    %2670 = vmatmul.bf16.gmra.mxu0 %v1673
    %v2671 = vpop.f32.mrf.mxu0
    %v2672 = vadd.f32 %v2658, %v2671
    %v2673 = vpop.f32.mrf.mxu0
    %v2674 = vadd.f32 %v2660, %v2673
    %2675 = vdwg.mxu0
    %v2676 = vmax.f32 %v2504, 0.0
    %v2677 = vmax.f32 %v2560, 0.0
    %v2678 = vmax.f32 %v2616, 0.0
    %v2679 = vmax.f32 %v2672, 0.0
    %v2680 = vmax.f32 %v2506, 0.0
    %v2681 = vmax.f32 %v2562, 0.0
    %v2682 = vmax.f32 %v2618, 0.0
    %v2683 = vmax.f32 %v2674, 0.0
    %v2684 = vpack.c.bf16 %v2680, %v2676
    %v2685 = vpack.c.bf16 %v2681, %v2677
    %v2686 = vpack.c.bf16 %v2682, %v2678
    %v2687 = vpack.c.bf16 %v2683, %v2679
    %v2688 = vld [vmem:[%s5] sm:$0xf]
    %v2689 = vld [vmem:[%s5 + $0x4] sm:$0xf]
    %v2690 = vld [vmem:[%s5 + $0x8] sm:$0xf]
    %v2691 = vld [vmem:[%s5 + $0xc] sm:$0xf]
    %v2692 = vld [vmem:[%s5 + $0x10] sm:$0xf]
    %v2693 = vld [vmem:[%s5 + $0x14] sm:$0xf]
    %v2694 = vld [vmem:[%s5 + $0x18] sm:$0xf]
    %v2695 = vld [vmem:[%s5 + $0x1c] sm:$0xf]
    %v2696 = vld [vmem:[%s5 + $0x20] sm:$0xf]
    %v2697 = vld [vmem:[%s5 + $0x24] sm:$0xf]
    %v2698 = vld [vmem:[%s5 + $0x28] sm:$0xf]
    %v2699 = vld [vmem:[%s5 + $0x2c] sm:$0xf]
    %v2700 = vld [vmem:[%s5 + $0x30] sm:$0xf]
    %v2701 = vld [vmem:[%s5 + $0x34] sm:$0xf]
    %v2702 = vld [vmem:[%s5 + $0x38] sm:$0xf]
    %v2703 = vld [vmem:[%s5 + $0x3c] sm:$0xf]
    %v2704 = vld [vmem:[%s5 + $0x40] sm:$0xf]
    %v2705 = vld [vmem:[%s5 + $0x44] sm:$0xf]
    %v2706 = vld [vmem:[%s5 + $0x48] sm:$0xf]
    %v2707 = vld [vmem:[%s5 + $0x4c] sm:$0xf]
    %v2708 = vld [vmem:[%s5 + $0x50] sm:$0xf]
    %v2709 = vld [vmem:[%s5 + $0x54] sm:$0xf]
    %v2710 = vld [vmem:[%s5 + $0x58] sm:$0xf]
    %v2711 = vld [vmem:[%s5 + $0x5c] sm:$0xf]
    %v2712 = vld [vmem:[%s5 + $0x60] sm:$0xf]
    %v2713 = vld [vmem:[%s5 + $0x64] sm:$0xf]
    %v2714 = vld [vmem:[%s5 + $0x68] sm:$0xf]
    %v2715 = vld [vmem:[%s5 + $0x6c] sm:$0xf]
    %v2716 = vld [vmem:[%s5 + $0x70] sm:$0xf]
    %v2717 = vld [vmem:[%s5 + $0x74] sm:$0xf]
    %v2718 = vld [vmem:[%s5 + $0x78] sm:$0xf]
    %v2719 = vld [vmem:[%s5 + $0x7c] sm:$0xf]
    %v2720 = vld [vmem:[%s5 + $0x80] sm:$0xf]
    %v2721 = vld [vmem:[%s5 + $0x84] sm:$0xf]
    %v2722 = vld [vmem:[%s5 + $0x88] sm:$0xf]
    %v2723 = vld [vmem:[%s5 + $0x8c] sm:$0xf]
    %v2724 = vld [vmem:[%s5 + $0x90] sm:$0xf]
    %v2725 = vld [vmem:[%s5 + $0x94] sm:$0xf]
    %v2726 = vld [vmem:[%s5 + $0x98] sm:$0xf]
    %v2727 = vld [vmem:[%s5 + $0x9c] sm:$0xf]
    %v2728 = vld [vmem:[%s5 + $0xa0] sm:$0xf]
    %v2729 = vld [vmem:[%s5 + $0xa4] sm:$0xf]
    %v2730 = vld [vmem:[%s5 + $0xa8] sm:$0xf]
    %v2731 = vld [vmem:[%s5 + $0xac] sm:$0xf]
    %v2732 = vld [vmem:[%s5 + $0xb0] sm:$0xf]
    %v2733 = vld [vmem:[%s5 + $0xb4] sm:$0xf]
    %v2734 = vld [vmem:[%s5 + $0xb8] sm:$0xf]
    %v2735 = vld [vmem:[%s5 + $0xbc] sm:$0xf]
    %v2736 = vld [vmem:[%s5 + $0xc0] sm:$0xf]
    %v2737 = vld [vmem:[%s5 + $0xc4] sm:$0xf]
    %v2738 = vld [vmem:[%s5 + $0xc8] sm:$0xf]
    %v2739 = vld [vmem:[%s5 + $0xcc] sm:$0xf]
    %v2740 = vld [vmem:[%s5 + $0xd0] sm:$0xf]
    %v2741 = vld [vmem:[%s5 + $0xd4] sm:$0xf]
    %v2742 = vld [vmem:[%s5 + $0xd8] sm:$0xf]
    %v2743 = vld [vmem:[%s5 + $0xdc] sm:$0xf]
    %v2744 = vld [vmem:[%s5 + $0xe0] sm:$0xf]
    %v2745 = vld [vmem:[%s5 + $0xe4] sm:$0xf]
    %v2746 = vld [vmem:[%s5 + $0xe8] sm:$0xf]
    %v2747 = vld [vmem:[%s5 + $0xec] sm:$0xf]
    %v2748 = vld [vmem:[%s5 + $0xf0] sm:$0xf]
    %v2749 = vld [vmem:[%s5 + $0xf4] sm:$0xf]
    %v2750 = vld [vmem:[%s5 + $0xf8] sm:$0xf]
    %v2751 = vld [vmem:[%s5 + $0xfc] sm:$0xf]
    %v2752 = vld [vmem:[%s6] sm:$0x1]
    %v2754 = vperm.slane %v2752, 0
    %v2820 = vunpack.c.l.b16 %v2688
    %v2821 = vunpack.c.l.b16 %v2689
    %v2822 = vunpack.c.l.b16 %v2690
    %v2823 = vunpack.c.l.b16 %v2691
    %v2824 = vunpack.c.l.b16 %v2692
    %v2825 = vunpack.c.l.b16 %v2693
    %v2826 = vunpack.c.l.b16 %v2694
    %v2827 = vunpack.c.l.b16 %v2695
    %v2828 = vunpack.c.l.b16 %v2696
    %v2829 = vunpack.c.l.b16 %v2697
    %v2830 = vunpack.c.l.b16 %v2698
    %v2831 = vunpack.c.l.b16 %v2699
    %v2832 = vunpack.c.l.b16 %v2700
    %v2833 = vunpack.c.l.b16 %v2701
    %v2834 = vunpack.c.l.b16 %v2702
    %v2835 = vunpack.c.l.b16 %v2703
    %v2836 = vunpack.c.l.b16 %v2704
    %v2837 = vunpack.c.l.b16 %v2705
    %v2838 = vunpack.c.l.b16 %v2706
    %v2839 = vunpack.c.l.b16 %v2707
    %v2840 = vunpack.c.l.b16 %v2708
    %v2841 = vunpack.c.l.b16 %v2709
    %v2842 = vunpack.c.l.b16 %v2710
    %v2843 = vunpack.c.l.b16 %v2711
    %v2844 = vunpack.c.l.b16 %v2712
    %v2845 = vunpack.c.l.b16 %v2713
    %v2846 = vunpack.c.l.b16 %v2714
    %v2847 = vunpack.c.l.b16 %v2715
    %v2848 = vunpack.c.l.b16 %v2716
    %v2849 = vunpack.c.l.b16 %v2717
    %v2850 = vunpack.c.l.b16 %v2718
    %v2851 = vunpack.c.l.b16 %v2719
    %v2852 = vunpack.c.l.b16 %v2720
    %v2853 = vunpack.c.l.b16 %v2721
    %v2854 = vunpack.c.l.b16 %v2722
    %v2855 = vunpack.c.l.b16 %v2723
    %v2856 = vunpack.c.l.b16 %v2724
    %v2857 = vunpack.c.l.b16 %v2725
    %v2858 = vunpack.c.l.b16 %v2726
    %v2859 = vunpack.c.l.b16 %v2727
    %v2860 = vunpack.c.l.b16 %v2728
    %v2861 = vunpack.c.l.b16 %v2729
    %v2862 = vunpack.c.l.b16 %v2730
    %v2863 = vunpack.c.l.b16 %v2731
    %v2864 = vunpack.c.l.b16 %v2732
    %v2865 = vunpack.c.l.b16 %v2733
    %v2866 = vunpack.c.l.b16 %v2734
    %v2867 = vunpack.c.l.b16 %v2735
    %v2868 = vunpack.c.l.b16 %v2736
    %v2869 = vunpack.c.l.b16 %v2737
    %v2870 = vunpack.c.l.b16 %v2738
    %v2871 = vunpack.c.l.b16 %v2739
    %v2872 = vunpack.c.l.b16 %v2740
    %v2873 = vunpack.c.l.b16 %v2741
    %v2874 = vunpack.c.l.b16 %v2742
    %v2875 = vunpack.c.l.b16 %v2743
    %v2876 = vunpack.c.l.b16 %v2744
    %v2877 = vunpack.c.l.b16 %v2745
    %v2878 = vunpack.c.l.b16 %v2746
    %v2879 = vunpack.c.l.b16 %v2747
    %v2880 = vunpack.c.l.b16 %v2748
    %v2881 = vunpack.c.l.b16 %v2749
    %v2882 = vunpack.c.l.b16 %v2750
    %v2883 = vunpack.c.l.b16 %v2751
    %v2884 = vpack.c.b16 %v2821, %v2820
    %v2885 = vpack.c.b16 %v2823, %v2822
    %v2886 = vpack.c.b16 %v2825, %v2824
    %v2887 = vpack.c.b16 %v2827, %v2826
    %v2888 = vpack.c.b16 %v2829, %v2828
    %v2889 = vpack.c.b16 %v2831, %v2830
    %v2890 = vpack.c.b16 %v2833, %v2832
    %v2891 = vpack.c.b16 %v2835, %v2834
    %v2892 = vpack.c.b16 %v2837, %v2836
    %v2893 = vpack.c.b16 %v2839, %v2838
    %v2894 = vpack.c.b16 %v2841, %v2840
    %v2895 = vpack.c.b16 %v2843, %v2842
    %v2896 = vpack.c.b16 %v2845, %v2844
    %v2897 = vpack.c.b16 %v2847, %v2846
    %v2898 = vpack.c.b16 %v2849, %v2848
    %v2899 = vpack.c.b16 %v2851, %v2850
    %v2900 = vpack.c.b16 %v2853, %v2852
    %v2901 = vpack.c.b16 %v2855, %v2854
    %v2902 = vpack.c.b16 %v2857, %v2856
    %v2903 = vpack.c.b16 %v2859, %v2858
    %v2904 = vpack.c.b16 %v2861, %v2860
    %v2905 = vpack.c.b16 %v2863, %v2862
    %v2906 = vpack.c.b16 %v2865, %v2864
    %v2907 = vpack.c.b16 %v2867, %v2866
    %v2908 = vpack.c.b16 %v2869, %v2868
    %v2909 = vpack.c.b16 %v2871, %v2870
    %v2910 = vpack.c.b16 %v2873, %v2872
    %v2911 = vpack.c.b16 %v2875, %v2874
    %v2912 = vpack.c.b16 %v2877, %v2876
    %v2913 = vpack.c.b16 %v2879, %v2878
    %v2914 = vpack.c.b16 %v2881, %v2880
    %v2915 = vpack.c.b16 %v2883, %v2882
    %2948 = vmatpush.bf16.msra.mxu0 %v2891
    %2949 = vmatpush.bf16.msra.mxu0 %v2890
    %2950 = vmatpush.bf16.msra.mxu0 %v2889
    %2951 = vmatpush.bf16.msra.mxu0 %v2888
    %2952 = vmatpush.bf16.msra.mxu0 %v2887
    %2953 = vmatpush.bf16.msra.mxu0 %v2886
    %2954 = vmatpush.bf16.msra.mxu0 %v2885
    %2955 = vmatpush.bf16.msra.mxu0 %v2884
    %2956 = vmatmul.bf16.gmra.mxu0 %v2684
    %v2957 = vpop.f32.mrf.mxu0
    %v2958 = vadd.f32 %v2754, %v2957
    %v2959 = vpop.f32.mrf.mxu0
    %v2960 = vadd.f32 %v2754, %v2959
    %2961 = vdwg.mxu0
    %2962 = vmatpush.bf16.msra.mxu0 %v2899
    %2963 = vmatpush.bf16.msra.mxu0 %v2898
    %2964 = vmatpush.bf16.msra.mxu0 %v2897
    %2965 = vmatpush.bf16.msra.mxu0 %v2896
    %2966 = vmatpush.bf16.msra.mxu0 %v2895
    %2967 = vmatpush.bf16.msra.mxu0 %v2894
    %2968 = vmatpush.bf16.msra.mxu0 %v2893
    %2969 = vmatpush.bf16.msra.mxu0 %v2892
    %2970 = vmatmul.bf16.gmra.mxu0 %v2685
    %v2971 = vpop.f32.mrf.mxu0
    %v2972 = vadd.f32 %v2958, %v2971
    %v2973 = vpop.f32.mrf.mxu0
    %v2974 = vadd.f32 %v2960, %v2973
    %2975 = vdwg.mxu0
    %2976 = vmatpush.bf16.msra.mxu0 %v2907
    %2977 = vmatpush.bf16.msra.mxu0 %v2906
    %2978 = vmatpush.bf16.msra.mxu0 %v2905
    %2979 = vmatpush.bf16.msra.mxu0 %v2904
    %2980 = vmatpush.bf16.msra.mxu0 %v2903
    %2981 = vmatpush.bf16.msra.mxu0 %v2902
    %2982 = vmatpush.bf16.msra.mxu0 %v2901
    %2983 = vmatpush.bf16.msra.mxu0 %v2900
    %2984 = vmatmul.bf16.gmra.mxu0 %v2686
    %v2985 = vpop.f32.mrf.mxu0
    %v2986 = vadd.f32 %v2972, %v2985
    %v2987 = vpop.f32.mrf.mxu0
    %v2988 = vadd.f32 %v2974, %v2987
    %2989 = vdwg.mxu0
    %2990 = vmatpush.bf16.msra.mxu0 %v2915
    %2991 = vmatpush.bf16.msra.mxu0 %v2914
    %2992 = vmatpush.bf16.msra.mxu0 %v2913
    %2993 = vmatpush.bf16.msra.mxu0 %v2912
    %2994 = vmatpush.bf16.msra.mxu0 %v2911
    %2995 = vmatpush.bf16.msra.mxu0 %v2910
    %2996 = vmatpush.bf16.msra.mxu0 %v2909
    %2997 = vmatpush.bf16.msra.mxu0 %v2908
    %2998 = vmatmul.bf16.gmra.mxu0 %v2687
    %v2999 = vpop.f32.mrf.mxu0
    %v3000 = vadd.f32 %v2986, %v2999
    %v3001 = vpop.f32.mrf.mxu0
    %v3002 = vadd.f32 %v2988, %v3001
    %3003 = vdwg.mxu0
    %3004 = vst [vmem:[%s7] sm:$0xff] %v3000
    %3005 = vst [vmem:[%s7 + $0x8] sm:$0xff] %v3002
    // Predicated region
    $region38: #{neural_network_forward.1} parent=1 // pred_check
      _
    $region39: #{neural_network_forward.1} parent=1 // pred_check_branch
      %3007 = sbr.rel (0) target = $region41
    $region40: #{neural_network_forward.1} parent=1 // pred_region
      _
    $region41: #{neural_network_forward.1} parent=1 // pred_fallthru
      _
    // Predicated region
    $region42: #{neural_network_forward.1} parent=1 // pred_check
      _
    $region43: #{neural_network_forward.1} parent=1 // pred_check_branch
      %3009 = sbr.rel (0) target = $region45
    $region44: #{neural_network_forward.1} parent=1 // pred_region
      _
    $region45: #{neural_network_forward.1} parent=1 // pred_fallthru
      _
    %3010 = vsyncpa [#allocation3], 1
    %3011 = vsyncpa [#allocation5], 1

</llo_original>
